<compile_context>
chip_gen: v6e
topology: v6e:2x2x1
jax: 0.10.0
libtpu: 0.0.40
codegen_flags: <defaults>
</compile_context>

<pallas_src>
import jax
import jax.numpy as jnp
from jax.experimental import pallas as pl
from jax.experimental.pallas import tpu as pltpu


def _erf(x):
    # Abramowitz & Stegun 7.1.26 rational approximation; with the approximate
    # EUP reciprocal the absolute error stays well below 1e-3 end-to-end.
    sign = jnp.where(x >= 0.0, 1.0, -1.0)
    ax = jnp.abs(x)
    t = pl.reciprocal(1.0 + 0.3275911 * ax, approx=True)
    poly = t * (0.254829592
                + t * (-0.284496736
                       + t * (1.421413741
                              + t * (-1.453152027 + t * 1.061405429))))
    return sign * (1.0 - poly * jnp.exp(-ax * ax))


def _gelu_exact(x):
    # Matches torch.nn.GELU() default (erf-based).
    return 0.5 * x * (1.0 + _erf(x * 0.7071067811865476))


def _attention_kernel(x_ref, wc_ref, bs_ref, b1_ref, w2_ref, b2_ref, o_ref):
    # x_ref / o_ref: (1, C, T, tS) VMEM blocks; all weights/biases live in SMEM.
    _, C, T, tS = x_ref.shape
    M = b1_ref.shape[0]
    J = 1 + 3 * M

    # ---- single pass over x: all 1+3M channel contractions at once ----------
    # acc[0]           = sum_c ws[c]      * x[c]          (spatial logit, no bias yet)
    # acc[1 + k*M + m] = sum_c w1[m,c,k]  * x[c]          (temporal tap k, hidden ch m)
    accs = [jnp.zeros((T, tS), jnp.float32) for _ in range(J)]
    for c in range(C):
        xc = x_ref[0, c]                      # (T, tS); x read once per channel
        for j in range(J):
            accs[j] = accs[j] + xc * wc_ref[j, c]

    # ---- spatial attention ---------------------------------------------------
    s_att = jax.nn.sigmoid(accs[0] + bs_ref[0])

    # ---- temporal attention --------------------------------------------------
    # y[m, t] = u0[m, t-1] + u1[m, t] + u2[m, t+1] + b1[m]   (zero-padded in t)
    zero_row = jnp.zeros((1, tS), jnp.float32)
    a_logit = jnp.zeros((T, tS), jnp.float32) + b2_ref[0]
    for m in range(M):
        u0 = accs[1 + 0 * M + m]              # tap over x[t-1]
        u1 = accs[1 + 1 * M + m]              # tap over x[t]
        u2 = accs[1 + 2 * M + m]              # tap over x[t+1]
        u0_sh = jnp.concatenate([zero_row, u0[:T - 1, :]], axis=0)
        u2_sh = jnp.concatenate([u2[1:, :], zero_row], axis=0)
        y = _gelu_exact(u0_sh + u1 + u2_sh + b1_ref[m])
        a_logit = a_logit + y * w2_ref[m]
    att = s_att * jax.nn.sigmoid(a_logit)     # (T, tS)

    # ---- modulate the input (broadcast of att over leading C is free) -------
    for c in range(C):
        o_ref[0, c] = (x_ref[0, c] * att).astype(o_ref.dtype)


def _pick_spatial_tile(S, C, T, elem_bytes=4):
    """Largest multiple-of-128 lane tile, capped at 512 lanes (~85% of the HBM
    roofline per measured tile sweeps) and by a conservative VMEM budget
    (in + out, double-buffered) that fits every TPU generation, incl. v7x."""
    budget = 8 * 1024 * 1024
    per_lane = 4 * C * T * elem_bytes         # 2 arrays x 2 pipeline buffers
    max_ts = max(128, (budget // per_lane) // 128 * 128)
    s_pad128 = -(-S // 128) * 128
    return int(min(max_ts, 512, s_pad128))


@jax.jit
def spatio_temporal_attention_3d(x_ncdhw, ws, bs, w1, b1, w2, b2):
    """x_ncdhw: (B, C, T, H, W) float32.  Returns the same shape/layout."""
    B, C, T, H, W = x_ncdhw.shape
    S = H * W
    M = w1.shape[0]

    # Contiguous reshape only (no transpose): (B, C, T, H, W) -> (B, C, T, S).
    x_k = x_ncdhw.reshape(B, C, T, S).astype(jnp.float32)

    ts = _pick_spatial_tile(S, C, T)
    S_pad = -(-S // ts) * ts
    if S_pad != S:
        # Zero padding is safe: all spatial positions are independent and
        # out = x * att, so padded columns produce zeros that we slice off.
        x_k = jnp.pad(x_k, ((0, 0), (0, 0), (0, 0), (0, S_pad - S)))

    # Fused channel-contraction table: row 0 = spatial 1x1x1 conv weight;
    # row 1 + k*M + m = temporal tap k (0: t-1, 1: t, 2: t+1) of hidden ch m.
    w1_r = w1.reshape(M, C, 3).astype(jnp.float32)
    wc = jnp.concatenate(
        [ws.reshape(1, C).astype(jnp.float32),
         w1_r[:, :, 0], w1_r[:, :, 1], w1_r[:, :, 2]], axis=0)       # (1+3M, C)

    bs_k = bs.reshape(1).astype(jnp.float32)
    b1_k = b1.reshape(M).astype(jnp.float32)
    w2_k = w2.reshape(M).astype(jnp.float32)
    b2_k = b2.reshape(1).astype(jnp.float32)

    out = pl.pallas_call(
        _attention_kernel,
        out_shape=jax.ShapeDtypeStruct((B, C, T, S_pad), jnp.float32),
        grid=(B, S_pad // ts),
        in_specs=[
            pl.BlockSpec((1, C, T, ts), lambda b, s: (b, 0, 0, s)),   # x
            pl.BlockSpec(memory_space=pltpu.MemorySpace.SMEM),        # wc  (1+3M, C)
            pl.BlockSpec(memory_space=pltpu.MemorySpace.SMEM),        # bs  (1,)
            pl.BlockSpec(memory_space=pltpu.MemorySpace.SMEM),        # b1  (M,)
            pl.BlockSpec(memory_space=pltpu.MemorySpace.SMEM),        # w2  (M,)
            pl.BlockSpec(memory_space=pltpu.MemorySpace.SMEM),        # b2  (1,)
        ],
        out_specs=pl.BlockSpec((1, C, T, ts), lambda b, s: (b, 0, 0, s)),
        compiler_params=pltpu.CompilerParams(
            dimension_semantics=("parallel", "parallel"),
            vmem_limit_bytes=32 * 1024 * 1024),
    )(x_k, wc, bs_k, b1_k, w2_k, b2_k)

    if S_pad != S:
        out = out[..., :S]
    return out.reshape(B, C, T, H, W)


def _reference(x, ws, bs, w1, b1, w2, b2):
    """Pure-JAX reference mirroring the PyTorch forward (x in NCDHW)."""
    B, C, T, H, W = x.shape
    M = w1.shape[0]
    spatial = jax.nn.sigmoid(jnp.einsum('bcthw,c->bthw', x, ws) + bs[0])[:, None]
    xpad = jnp.pad(x, ((0, 0), (0, 0), (1, 1), (0, 0), (0, 0)))
    w1r = w1.reshape(M, C, 3)
    y = jnp.zeros((B, M, T, H, W), x.dtype)
    for k in range(3):
        y = y + jnp.einsum('bcthw,mc->bmthw', xpad[:, :, k:k + T], w1r[:, :, k])
    y = y + b1[None, :, None, None, None]
    y = jax.nn.gelu(y, approximate=False)
    temporal = jax.nn.sigmoid(
        jnp.einsum('bmthw,m->bthw', y, w2.reshape(M)) + b2[0])[:, None]
    return x * (spatial * temporal)


if __name__ == "__main__":
    B, C, T, H, W = 2, 16, 8, 16, 16
    M = C // 8

    key = jax.random.PRNGKey(0)
    ks = jax.random.split(key, 7)
    x = jax.random.normal(ks[0], (B, C, T, H, W), jnp.float32)

    # Deterministic synthetic parameters (PyTorch Conv3d weight layouts).
    ws = jax.random.normal(ks[1], (C,), jnp.float32) * 0.2          # Conv3d(C,1,1) weight
    bs = jax.random.normal(ks[2], (1,), jnp.float32) * 0.1
    w1 = jax.random.normal(ks[3], (M, C, 3, 1, 1), jnp.float32) * 0.2
    b1 = jax.random.normal(ks[4], (M,), jnp.float32) * 0.1
    w2 = jax.random.normal(ks[5], (1, M, 1, 1, 1), jnp.float32) * 0.2
    b2 = jax.random.normal(ks[6], (1,), jnp.float32) * 0.1

    out = spatio_temporal_attention_3d(x, ws, bs, w1, b1, w2, b2)
    out = jax.block_until_ready(out)

    ref = _reference(x, ws, bs, w1, b1, w2, b2)
    assert out.shape == (B, C, T, H, W)
    assert jnp.allclose(out, ref, atol=2e-3, rtol=2e-3), "mismatch vs reference"

    print("KERNEL_OK")
</pallas_src>

<mosaic_0001>
module attributes {stable_mosaic.version = 11 : i64} {
  func.func @_attention_kernel(%arg0: i32, %arg1: i32, %arg2: memref<1x16x8x256xf32, #tpu.memory_space<vmem>>, %arg3: memref<7x16xf32, #tpu.memory_space<smem>>, %arg4: memref<1xf32, #tpu.memory_space<smem>>, %arg5: memref<2xf32, #tpu.memory_space<smem>>, %arg6: memref<2xf32, #tpu.memory_space<smem>>, %arg7: memref<1xf32, #tpu.memory_space<smem>>, %arg8: memref<1x16x8x256xf32, #tpu.memory_space<vmem>>) attributes {dimension_semantics = [#tpu.dimension_semantics<parallel>, #tpu.dimension_semantics<parallel>], iteration_bounds = array<i64: 2, 1>, scalar_prefetch = 0 : i64, scratch_operands = 0 : i64, tpu.core_type = #tpu.core_type<tc>, window_params = [{transform_indices = @transform_0, window_bounds = array<i64: 1, 16, 8, 256>}, {transform_indices = @transform_1, window_bounds = array<i64: 7, 16>}, {transform_indices = @transform_2, window_bounds = array<i64: 1>}, {transform_indices = @transform_3, window_bounds = array<i64: 2>}, {transform_indices = @transform_4, window_bounds = array<i64: 2>}, {transform_indices = @transform_5, window_bounds = array<i64: 1>}, {transform_indices = @transform_6, window_bounds = array<i64: 1, 16, 8, 256>}]} {
    %cst = arith.constant 0.000000e+00 : f32
    %0 = vector.broadcast %cst : f32 to vector<8x256xf32>
    %cst_0 = arith.constant 0.000000e+00 : f32
    %1 = vector.broadcast %cst_0 : f32 to vector<8x256xf32>
    %cst_1 = arith.constant 0.000000e+00 : f32
    %2 = vector.broadcast %cst_1 : f32 to vector<8x256xf32>
    %cst_2 = arith.constant 0.000000e+00 : f32
    %3 = vector.broadcast %cst_2 : f32 to vector<8x256xf32>
    %cst_3 = arith.constant 0.000000e+00 : f32
    %4 = vector.broadcast %cst_3 : f32 to vector<8x256xf32>
    %cst_4 = arith.constant 0.000000e+00 : f32
    %5 = vector.broadcast %cst_4 : f32 to vector<8x256xf32>
    %cst_5 = arith.constant 0.000000e+00 : f32
    %6 = vector.broadcast %cst_5 : f32 to vector<8x256xf32>
    %c0 = arith.constant 0 : index
    %c0_6 = arith.constant 0 : index
    %c0_7 = arith.constant 0 : index
    %c0_8 = arith.constant 0 : index
    %7 = vector.load %arg2[%c0, %c0_6, %c0_7, %c0_8] : memref<1x16x8x256xf32, #tpu.memory_space<vmem>>, vector<1x1x8x256xf32>
    %8 = vector.shape_cast %7 : vector<1x1x8x256xf32> to vector<8x256xf32>
    %c0_9 = arith.constant 0 : index
    %c0_10 = arith.constant 0 : index
    %9 = memref.load %arg3[%c0_9, %c0_10] : memref<7x16xf32, #tpu.memory_space<smem>>
    %10 = vector.broadcast %9 : f32 to vector<8x256xf32>
    %11 = arith.mulf %8, %10 : vector<8x256xf32>
    %12 = arith.addf %0, %11 : vector<8x256xf32>
    %c1 = arith.constant 1 : index
    %c0_11 = arith.constant 0 : index
    %13 = memref.load %arg3[%c1, %c0_11] : memref<7x16xf32, #tpu.memory_space<smem>>
    %14 = vector.broadcast %13 : f32 to vector<8x256xf32>
    %15 = arith.mulf %8, %14 : vector<8x256xf32>
    %16 = arith.addf %1, %15 : vector<8x256xf32>
    %c2 = arith.constant 2 : index
    %c0_12 = arith.constant 0 : index
    %17 = memref.load %arg3[%c2, %c0_12] : memref<7x16xf32, #tpu.memory_space<smem>>
    %18 = vector.broadcast %17 : f32 to vector<8x256xf32>
    %19 = arith.mulf %8, %18 : vector<8x256xf32>
    %20 = arith.addf %2, %19 : vector<8x256xf32>
    %c3 = arith.constant 3 : index
    %c0_13 = arith.constant 0 : index
    %21 = memref.load %arg3[%c3, %c0_13] : memref<7x16xf32, #tpu.memory_space<smem>>
    %22 = vector.broadcast %21 : f32 to vector<8x256xf32>
    %23 = arith.mulf %8, %22 : vector<8x256xf32>
    %24 = arith.addf %3, %23 : vector<8x256xf32>
    %c4 = arith.constant 4 : index
    %c0_14 = arith.constant 0 : index
    %25 = memref.load %arg3[%c4, %c0_14] : memref<7x16xf32, #tpu.memory_space<smem>>
    %26 = vector.broadcast %25 : f32 to vector<8x256xf32>
    %27 = arith.mulf %8, %26 : vector<8x256xf32>
    %28 = arith.addf %4, %27 : vector<8x256xf32>
    %c5 = arith.constant 5 : index
    %c0_15 = arith.constant 0 : index
    %29 = memref.load %arg3[%c5, %c0_15] : memref<7x16xf32, #tpu.memory_space<smem>>
    %30 = vector.broadcast %29 : f32 to vector<8x256xf32>
    %31 = arith.mulf %8, %30 : vector<8x256xf32>
    %32 = arith.addf %5, %31 : vector<8x256xf32>
    %c6 = arith.constant 6 : index
    %c0_16 = arith.constant 0 : index
    %33 = memref.load %arg3[%c6, %c0_16] : memref<7x16xf32, #tpu.memory_space<smem>>
    %34 = vector.broadcast %33 : f32 to vector<8x256xf32>
    %35 = arith.mulf %8, %34 : vector<8x256xf32>
    %36 = arith.addf %6, %35 : vector<8x256xf32>
    %c0_17 = arith.constant 0 : index
    %c1_18 = arith.constant 1 : index
    %c0_19 = arith.constant 0 : index
    %c0_20 = arith.constant 0 : index
    %37 = vector.load %arg2[%c0_17, %c1_18, %c0_19, %c0_20] : memref<1x16x8x256xf32, #tpu.memory_space<vmem>>, vector<1x1x8x256xf32>
    %38 = vector.shape_cast %37 : vector<1x1x8x256xf32> to vector<8x256xf32>
    %c0_21 = arith.constant 0 : index
    %c1_22 = arith.constant 1 : index
    %39 = memref.load %arg3[%c0_21, %c1_22] : memref<7x16xf32, #tpu.memory_space<smem>>
    %40 = vector.broadcast %39 : f32 to vector<8x256xf32>
    %41 = arith.mulf %38, %40 : vector<8x256xf32>
    %42 = arith.addf %12, %41 : vector<8x256xf32>
    %c1_23 = arith.constant 1 : index
    %c1_24 = arith.constant 1 : index
    %43 = memref.load %arg3[%c1_23, %c1_24] : memref<7x16xf32, #tpu.memory_space<smem>>
    %44 = vector.broadcast %43 : f32 to vector<8x256xf32>
    %45 = arith.mulf %38, %44 : vector<8x256xf32>
    %46 = arith.addf %16, %45 : vector<8x256xf32>
    %c2_25 = arith.constant 2 : index
    %c1_26 = arith.constant 1 : index
    %47 = memref.load %arg3[%c2_25, %c1_26] : memref<7x16xf32, #tpu.memory_space<smem>>
    %48 = vector.broadcast %47 : f32 to vector<8x256xf32>
    %49 = arith.mulf %38, %48 : vector<8x256xf32>
    %50 = arith.addf %20, %49 : vector<8x256xf32>
    %c3_27 = arith.constant 3 : index
    %c1_28 = arith.constant 1 : index
    %51 = memref.load %arg3[%c3_27, %c1_28] : memref<7x16xf32, #tpu.memory_space<smem>>
    %52 = vector.broadcast %51 : f32 to vector<8x256xf32>
    %53 = arith.mulf %38, %52 : vector<8x256xf32>
    %54 = arith.addf %24, %53 : vector<8x256xf32>
    %c4_29 = arith.constant 4 : index
    %c1_30 = arith.constant 1 : index
    %55 = memref.load %arg3[%c4_29, %c1_30] : memref<7x16xf32, #tpu.memory_space<smem>>
    %56 = vector.broadcast %55 : f32 to vector<8x256xf32>
    %57 = arith.mulf %38, %56 : vector<8x256xf32>
    %58 = arith.addf %28, %57 : vector<8x256xf32>
    %c5_31 = arith.constant 5 : index
    %c1_32 = arith.constant 1 : index
    %59 = memref.load %arg3[%c5_31, %c1_32] : memref<7x16xf32, #tpu.memory_space<smem>>
    %60 = vector.broadcast %59 : f32 to vector<8x256xf32>
    %61 = arith.mulf %38, %60 : vector<8x256xf32>
    %62 = arith.addf %32, %61 : vector<8x256xf32>
    %c6_33 = arith.constant 6 : index
    %c1_34 = arith.constant 1 : index
    %63 = memref.load %arg3[%c6_33, %c1_34] : memref<7x16xf32, #tpu.memory_space<smem>>
    %64 = vector.broadcast %63 : f32 to vector<8x256xf32>
    %65 = arith.mulf %38, %64 : vector<8x256xf32>
    %66 = arith.addf %36, %65 : vector<8x256xf32>
    %c0_35 = arith.constant 0 : index
    %c2_36 = arith.constant 2 : index
    %c0_37 = arith.constant 0 : index
    %c0_38 = arith.constant 0 : index
    %67 = vector.load %arg2[%c0_35, %c2_36, %c0_37, %c0_38] : memref<1x16x8x256xf32, #tpu.memory_space<vmem>>, vector<1x1x8x256xf32>
    %68 = vector.shape_cast %67 : vector<1x1x8x256xf32> to vector<8x256xf32>
    %c0_39 = arith.constant 0 : index
    %c2_40 = arith.constant 2 : index
    %69 = memref.load %arg3[%c0_39, %c2_40] : memref<7x16xf32, #tpu.memory_space<smem>>
    %70 = vector.broadcast %69 : f32 to vector<8x256xf32>
    %71 = arith.mulf %68, %70 : vector<8x256xf32>
    %72 = arith.addf %42, %71 : vector<8x256xf32>
    %c1_41 = arith.constant 1 : index
    %c2_42 = arith.constant 2 : index
    %73 = memref.load %arg3[%c1_41, %c2_42] : memref<7x16xf32, #tpu.memory_space<smem>>
    %74 = vector.broadcast %73 : f32 to vector<8x256xf32>
    %75 = arith.mulf %68, %74 : vector<8x256xf32>
    %76 = arith.addf %46, %75 : vector<8x256xf32>
    %c2_43 = arith.constant 2 : index
    %c2_44 = arith.constant 2 : index
    %77 = memref.load %arg3[%c2_43, %c2_44] : memref<7x16xf32, #tpu.memory_space<smem>>
    %78 = vector.broadcast %77 : f32 to vector<8x256xf32>
    %79 = arith.mulf %68, %78 : vector<8x256xf32>
    %80 = arith.addf %50, %79 : vector<8x256xf32>
    %c3_45 = arith.constant 3 : index
    %c2_46 = arith.constant 2 : index
    %81 = memref.load %arg3[%c3_45, %c2_46] : memref<7x16xf32, #tpu.memory_space<smem>>
    %82 = vector.broadcast %81 : f32 to vector<8x256xf32>
    %83 = arith.mulf %68, %82 : vector<8x256xf32>
    %84 = arith.addf %54, %83 : vector<8x256xf32>
    %c4_47 = arith.constant 4 : index
    %c2_48 = arith.constant 2 : index
    %85 = memref.load %arg3[%c4_47, %c2_48] : memref<7x16xf32, #tpu.memory_space<smem>>
    %86 = vector.broadcast %85 : f32 to vector<8x256xf32>
    %87 = arith.mulf %68, %86 : vector<8x256xf32>
    %88 = arith.addf %58, %87 : vector<8x256xf32>
    %c5_49 = arith.constant 5 : index
    %c2_50 = arith.constant 2 : index
    %89 = memref.load %arg3[%c5_49, %c2_50] : memref<7x16xf32, #tpu.memory_space<smem>>
    %90 = vector.broadcast %89 : f32 to vector<8x256xf32>
    %91 = arith.mulf %68, %90 : vector<8x256xf32>
    %92 = arith.addf %62, %91 : vector<8x256xf32>
    %c6_51 = arith.constant 6 : index
    %c2_52 = arith.constant 2 : index
    %93 = memref.load %arg3[%c6_51, %c2_52] : memref<7x16xf32, #tpu.memory_space<smem>>
    %94 = vector.broadcast %93 : f32 to vector<8x256xf32>
    %95 = arith.mulf %68, %94 : vector<8x256xf32>
    %96 = arith.addf %66, %95 : vector<8x256xf32>
    %c0_53 = arith.constant 0 : index
    %c3_54 = arith.constant 3 : index
    %c0_55 = arith.constant 0 : index
    %c0_56 = arith.constant 0 : index
    %97 = vector.load %arg2[%c0_53, %c3_54, %c0_55, %c0_56] : memref<1x16x8x256xf32, #tpu.memory_space<vmem>>, vector<1x1x8x256xf32>
    %98 = vector.shape_cast %97 : vector<1x1x8x256xf32> to vector<8x256xf32>
    %c0_57 = arith.constant 0 : index
    %c3_58 = arith.constant 3 : index
    %99 = memref.load %arg3[%c0_57, %c3_58] : memref<7x16xf32, #tpu.memory_space<smem>>
    %100 = vector.broadcast %99 : f32 to vector<8x256xf32>
    %101 = arith.mulf %98, %100 : vector<8x256xf32>
    %102 = arith.addf %72, %101 : vector<8x256xf32>
    %c1_59 = arith.constant 1 : index
    %c3_60 = arith.constant 3 : index
    %103 = memref.load %arg3[%c1_59, %c3_60] : memref<7x16xf32, #tpu.memory_space<smem>>
    %104 = vector.broadcast %103 : f32 to vector<8x256xf32>
    %105 = arith.mulf %98, %104 : vector<8x256xf32>
    %106 = arith.addf %76, %105 : vector<8x256xf32>
    %c2_61 = arith.constant 2 : index
    %c3_62 = arith.constant 3 : index
    %107 = memref.load %arg3[%c2_61, %c3_62] : memref<7x16xf32, #tpu.memory_space<smem>>
    %108 = vector.broadcast %107 : f32 to vector<8x256xf32>
    %109 = arith.mulf %98, %108 : vector<8x256xf32>
    %110 = arith.addf %80, %109 : vector<8x256xf32>
    %c3_63 = arith.constant 3 : index
    %c3_64 = arith.constant 3 : index
    %111 = memref.load %arg3[%c3_63, %c3_64] : memref<7x16xf32, #tpu.memory_space<smem>>
    %112 = vector.broadcast %111 : f32 to vector<8x256xf32>
    %113 = arith.mulf %98, %112 : vector<8x256xf32>
    %114 = arith.addf %84, %113 : vector<8x256xf32>
    %c4_65 = arith.constant 4 : index
    %c3_66 = arith.constant 3 : index
    %115 = memref.load %arg3[%c4_65, %c3_66] : memref<7x16xf32, #tpu.memory_space<smem>>
    %116 = vector.broadcast %115 : f32 to vector<8x256xf32>
    %117 = arith.mulf %98, %116 : vector<8x256xf32>
    %118 = arith.addf %88, %117 : vector<8x256xf32>
    %c5_67 = arith.constant 5 : index
    %c3_68 = arith.constant 3 : index
    %119 = memref.load %arg3[%c5_67, %c3_68] : memref<7x16xf32, #tpu.memory_space<smem>>
    %120 = vector.broadcast %119 : f32 to vector<8x256xf32>
    %121 = arith.mulf %98, %120 : vector<8x256xf32>
    %122 = arith.addf %92, %121 : vector<8x256xf32>
    %c6_69 = arith.constant 6 : index
    %c3_70 = arith.constant 3 : index
    %123 = memref.load %arg3[%c6_69, %c3_70] : memref<7x16xf32, #tpu.memory_space<smem>>
    %124 = vector.broadcast %123 : f32 to vector<8x256xf32>
    %125 = arith.mulf %98, %124 : vector<8x256xf32>
    %126 = arith.addf %96, %125 : vector<8x256xf32>
    %c0_71 = arith.constant 0 : index
    %c4_72 = arith.constant 4 : index
    %c0_73 = arith.constant 0 : index
    %c0_74 = arith.constant 0 : index
    %127 = vector.load %arg2[%c0_71, %c4_72, %c0_73, %c0_74] : memref<1x16x8x256xf32, #tpu.memory_space<vmem>>, vector<1x1x8x256xf32>
    %128 = vector.shape_cast %127 : vector<1x1x8x256xf32> to vector<8x256xf32>
    %c0_75 = arith.constant 0 : index
    %c4_76 = arith.constant 4 : index
    %129 = memref.load %arg3[%c0_75, %c4_76] : memref<7x16xf32, #tpu.memory_space<smem>>
    %130 = vector.broadcast %129 : f32 to vector<8x256xf32>
    %131 = arith.mulf %128, %130 : vector<8x256xf32>
    %132 = arith.addf %102, %131 : vector<8x256xf32>
    %c1_77 = arith.constant 1 : index
    %c4_78 = arith.constant 4 : index
    %133 = memref.load %arg3[%c1_77, %c4_78] : memref<7x16xf32, #tpu.memory_space<smem>>
    %134 = vector.broadcast %133 : f32 to vector<8x256xf32>
    %135 = arith.mulf %128, %134 : vector<8x256xf32>
    %136 = arith.addf %106, %135 : vector<8x256xf32>
    %c2_79 = arith.constant 2 : index
    %c4_80 = arith.constant 4 : index
    %137 = memref.load %arg3[%c2_79, %c4_80] : memref<7x16xf32, #tpu.memory_space<smem>>
    %138 = vector.broadcast %137 : f32 to vector<8x256xf32>
    %139 = arith.mulf %128, %138 : vector<8x256xf32>
    %140 = arith.addf %110, %139 : vector<8x256xf32>
    %c3_81 = arith.constant 3 : index
    %c4_82 = arith.constant 4 : index
    %141 = memref.load %arg3[%c3_81, %c4_82] : memref<7x16xf32, #tpu.memory_space<smem>>
    %142 = vector.broadcast %141 : f32 to vector<8x256xf32>
    %143 = arith.mulf %128, %142 : vector<8x256xf32>
    %144 = arith.addf %114, %143 : vector<8x256xf32>
    %c4_83 = arith.constant 4 : index
    %c4_84 = arith.constant 4 : index
    %145 = memref.load %arg3[%c4_83, %c4_84] : memref<7x16xf32, #tpu.memory_space<smem>>
    %146 = vector.broadcast %145 : f32 to vector<8x256xf32>
    %147 = arith.mulf %128, %146 : vector<8x256xf32>
    %148 = arith.addf %118, %147 : vector<8x256xf32>
    %c5_85 = arith.constant 5 : index
    %c4_86 = arith.constant 4 : index
    %149 = memref.load %arg3[%c5_85, %c4_86] : memref<7x16xf32, #tpu.memory_space<smem>>
    %150 = vector.broadcast %149 : f32 to vector<8x256xf32>
    %151 = arith.mulf %128, %150 : vector<8x256xf32>
    %152 = arith.addf %122, %151 : vector<8x256xf32>
    %c6_87 = arith.constant 6 : index
    %c4_88 = arith.constant 4 : index
    %153 = memref.load %arg3[%c6_87, %c4_88] : memref<7x16xf32, #tpu.memory_space<smem>>
    %154 = vector.broadcast %153 : f32 to vector<8x256xf32>
    %155 = arith.mulf %128, %154 : vector<8x256xf32>
    %156 = arith.addf %126, %155 : vector<8x256xf32>
    %c0_89 = arith.constant 0 : index
    %c5_90 = arith.constant 5 : index
    %c0_91 = arith.constant 0 : index
    %c0_92 = arith.constant 0 : index
    %157 = vector.load %arg2[%c0_89, %c5_90, %c0_91, %c0_92] : memref<1x16x8x256xf32, #tpu.memory_space<vmem>>, vector<1x1x8x256xf32>
    %158 = vector.shape_cast %157 : vector<1x1x8x256xf32> to vector<8x256xf32>
    %c0_93 = arith.constant 0 : index
    %c5_94 = arith.constant 5 : index
    %159 = memref.load %arg3[%c0_93, %c5_94] : memref<7x16xf32, #tpu.memory_space<smem>>
    %160 = vector.broadcast %159 : f32 to vector<8x256xf32>
    %161 = arith.mulf %158, %160 : vector<8x256xf32>
    %162 = arith.addf %132, %161 : vector<8x256xf32>
    %c1_95 = arith.constant 1 : index
    %c5_96 = arith.constant 5 : index
    %163 = memref.load %arg3[%c1_95, %c5_96] : memref<7x16xf32, #tpu.memory_space<smem>>
    %164 = vector.broadcast %163 : f32 to vector<8x256xf32>
    %165 = arith.mulf %158, %164 : vector<8x256xf32>
    %166 = arith.addf %136, %165 : vector<8x256xf32>
    %c2_97 = arith.constant 2 : index
    %c5_98 = arith.constant 5 : index
    %167 = memref.load %arg3[%c2_97, %c5_98] : memref<7x16xf32, #tpu.memory_space<smem>>
    %168 = vector.broadcast %167 : f32 to vector<8x256xf32>
    %169 = arith.mulf %158, %168 : vector<8x256xf32>
    %170 = arith.addf %140, %169 : vector<8x256xf32>
    %c3_99 = arith.constant 3 : index
    %c5_100 = arith.constant 5 : index
    %171 = memref.load %arg3[%c3_99, %c5_100] : memref<7x16xf32, #tpu.memory_space<smem>>
    %172 = vector.broadcast %171 : f32 to vector<8x256xf32>
    %173 = arith.mulf %158, %172 : vector<8x256xf32>
    %174 = arith.addf %144, %173 : vector<8x256xf32>
    %c4_101 = arith.constant 4 : index
    %c5_102 = arith.constant 5 : index
    %175 = memref.load %arg3[%c4_101, %c5_102] : memref<7x16xf32, #tpu.memory_space<smem>>
    %176 = vector.broadcast %175 : f32 to vector<8x256xf32>
    %177 = arith.mulf %158, %176 : vector<8x256xf32>
    %178 = arith.addf %148, %177 : vector<8x256xf32>
    %c5_103 = arith.constant 5 : index
    %c5_104 = arith.constant 5 : index
    %179 = memref.load %arg3[%c5_103, %c5_104] : memref<7x16xf32, #tpu.memory_space<smem>>
    %180 = vector.broadcast %179 : f32 to vector<8x256xf32>
    %181 = arith.mulf %158, %180 : vector<8x256xf32>
    %182 = arith.addf %152, %181 : vector<8x256xf32>
    %c6_105 = arith.constant 6 : index
    %c5_106 = arith.constant 5 : index
    %183 = memref.load %arg3[%c6_105, %c5_106] : memref<7x16xf32, #tpu.memory_space<smem>>
    %184 = vector.broadcast %183 : f32 to vector<8x256xf32>
    %185 = arith.mulf %158, %184 : vector<8x256xf32>
    %186 = arith.addf %156, %185 : vector<8x256xf32>
    %c0_107 = arith.constant 0 : index
    %c6_108 = arith.constant 6 : index
    %c0_109 = arith.constant 0 : index
    %c0_110 = arith.constant 0 : index
    %187 = vector.load %arg2[%c0_107, %c6_108, %c0_109, %c0_110] : memref<1x16x8x256xf32, #tpu.memory_space<vmem>>, vector<1x1x8x256xf32>
    %188 = vector.shape_cast %187 : vector<1x1x8x256xf32> to vector<8x256xf32>
    %c0_111 = arith.constant 0 : index
    %c6_112 = arith.constant 6 : index
    %189 = memref.load %arg3[%c0_111, %c6_112] : memref<7x16xf32, #tpu.memory_space<smem>>
    %190 = vector.broadcast %189 : f32 to vector<8x256xf32>
    %191 = arith.mulf %188, %190 : vector<8x256xf32>
    %192 = arith.addf %162, %191 : vector<8x256xf32>
    %c1_113 = arith.constant 1 : index
    %c6_114 = arith.constant 6 : index
    %193 = memref.load %arg3[%c1_113, %c6_114] : memref<7x16xf32, #tpu.memory_space<smem>>
    %194 = vector.broadcast %193 : f32 to vector<8x256xf32>
    %195 = arith.mulf %188, %194 : vector<8x256xf32>
    %196 = arith.addf %166, %195 : vector<8x256xf32>
    %c2_115 = arith.constant 2 : index
    %c6_116 = arith.constant 6 : index
    %197 = memref.load %arg3[%c2_115, %c6_116] : memref<7x16xf32, #tpu.memory_space<smem>>
    %198 = vector.broadcast %197 : f32 to vector<8x256xf32>
    %199 = arith.mulf %188, %198 : vector<8x256xf32>
    %200 = arith.addf %170, %199 : vector<8x256xf32>
    %c3_117 = arith.constant 3 : index
    %c6_118 = arith.constant 6 : index
    %201 = memref.load %arg3[%c3_117, %c6_118] : memref<7x16xf32, #tpu.memory_space<smem>>
    %202 = vector.broadcast %201 : f32 to vector<8x256xf32>
    %203 = arith.mulf %188, %202 : vector<8x256xf32>
    %204 = arith.addf %174, %203 : vector<8x256xf32>
    %c4_119 = arith.constant 4 : index
    %c6_120 = arith.constant 6 : index
    %205 = memref.load %arg3[%c4_119, %c6_120] : memref<7x16xf32, #tpu.memory_space<smem>>
    %206 = vector.broadcast %205 : f32 to vector<8x256xf32>
    %207 = arith.mulf %188, %206 : vector<8x256xf32>
    %208 = arith.addf %178, %207 : vector<8x256xf32>
    %c5_121 = arith.constant 5 : index
    %c6_122 = arith.constant 6 : index
    %209 = memref.load %arg3[%c5_121, %c6_122] : memref<7x16xf32, #tpu.memory_space<smem>>
    %210 = vector.broadcast %209 : f32 to vector<8x256xf32>
    %211 = arith.mulf %188, %210 : vector<8x256xf32>
    %212 = arith.addf %182, %211 : vector<8x256xf32>
    %c6_123 = arith.constant 6 : index
    %c6_124 = arith.constant 6 : index
    %213 = memref.load %arg3[%c6_123, %c6_124] : memref<7x16xf32, #tpu.memory_space<smem>>
    %214 = vector.broadcast %213 : f32 to vector<8x256xf32>
    %215 = arith.mulf %188, %214 : vector<8x256xf32>
    %216 = arith.addf %186, %215 : vector<8x256xf32>
    %c0_125 = arith.constant 0 : index
    %c7 = arith.constant 7 : index
    %c0_126 = arith.constant 0 : index
    %c0_127 = arith.constant 0 : index
    %217 = vector.load %arg2[%c0_125, %c7, %c0_126, %c0_127] : memref<1x16x8x256xf32, #tpu.memory_space<vmem>>, vector<1x1x8x256xf32>
    %218 = vector.shape_cast %217 : vector<1x1x8x256xf32> to vector<8x256xf32>
    %c0_128 = arith.constant 0 : index
    %c7_129 = arith.constant 7 : index
    %219 = memref.load %arg3[%c0_128, %c7_129] : memref<7x16xf32, #tpu.memory_space<smem>>
    %220 = vector.broadcast %219 : f32 to vector<8x256xf32>
    %221 = arith.mulf %218, %220 : vector<8x256xf32>
    %222 = arith.addf %192, %221 : vector<8x256xf32>
    %c1_130 = arith.constant 1 : index
    %c7_131 = arith.constant 7 : index
    %223 = memref.load %arg3[%c1_130, %c7_131] : memref<7x16xf32, #tpu.memory_space<smem>>
    %224 = vector.broadcast %223 : f32 to vector<8x256xf32>
    %225 = arith.mulf %218, %224 : vector<8x256xf32>
    %226 = arith.addf %196, %225 : vector<8x256xf32>
    %c2_132 = arith.constant 2 : index
    %c7_133 = arith.constant 7 : index
    %227 = memref.load %arg3[%c2_132, %c7_133] : memref<7x16xf32, #tpu.memory_space<smem>>
    %228 = vector.broadcast %227 : f32 to vector<8x256xf32>
    %229 = arith.mulf %218, %228 : vector<8x256xf32>
    %230 = arith.addf %200, %229 : vector<8x256xf32>
    %c3_134 = arith.constant 3 : index
    %c7_135 = arith.constant 7 : index
    %231 = memref.load %arg3[%c3_134, %c7_135] : memref<7x16xf32, #tpu.memory_space<smem>>
    %232 = vector.broadcast %231 : f32 to vector<8x256xf32>
    %233 = arith.mulf %218, %232 : vector<8x256xf32>
    %234 = arith.addf %204, %233 : vector<8x256xf32>
    %c4_136 = arith.constant 4 : index
    %c7_137 = arith.constant 7 : index
    %235 = memref.load %arg3[%c4_136, %c7_137] : memref<7x16xf32, #tpu.memory_space<smem>>
    %236 = vector.broadcast %235 : f32 to vector<8x256xf32>
    %237 = arith.mulf %218, %236 : vector<8x256xf32>
    %238 = arith.addf %208, %237 : vector<8x256xf32>
    %c5_138 = arith.constant 5 : index
    %c7_139 = arith.constant 7 : index
    %239 = memref.load %arg3[%c5_138, %c7_139] : memref<7x16xf32, #tpu.memory_space<smem>>
    %240 = vector.broadcast %239 : f32 to vector<8x256xf32>
    %241 = arith.mulf %218, %240 : vector<8x256xf32>
    %242 = arith.addf %212, %241 : vector<8x256xf32>
    %c6_140 = arith.constant 6 : index
    %c7_141 = arith.constant 7 : index
    %243 = memref.load %arg3[%c6_140, %c7_141] : memref<7x16xf32, #tpu.memory_space<smem>>
    %244 = vector.broadcast %243 : f32 to vector<8x256xf32>
    %245 = arith.mulf %218, %244 : vector<8x256xf32>
    %246 = arith.addf %216, %245 : vector<8x256xf32>
    %c0_142 = arith.constant 0 : index
    %c8 = arith.constant 8 : index
    %c0_143 = arith.constant 0 : index
    %c0_144 = arith.constant 0 : index
    %247 = vector.load %arg2[%c0_142, %c8, %c0_143, %c0_144] : memref<1x16x8x256xf32, #tpu.memory_space<vmem>>, vector<1x1x8x256xf32>
    %248 = vector.shape_cast %247 : vector<1x1x8x256xf32> to vector<8x256xf32>
    %c0_145 = arith.constant 0 : index
    %c8_146 = arith.constant 8 : index
    %249 = memref.load %arg3[%c0_145, %c8_146] : memref<7x16xf32, #tpu.memory_space<smem>>
    %250 = vector.broadcast %249 : f32 to vector<8x256xf32>
    %251 = arith.mulf %248, %250 : vector<8x256xf32>
    %252 = arith.addf %222, %251 : vector<8x256xf32>
    %c1_147 = arith.constant 1 : index
    %c8_148 = arith.constant 8 : index
    %253 = memref.load %arg3[%c1_147, %c8_148] : memref<7x16xf32, #tpu.memory_space<smem>>
    %254 = vector.broadcast %253 : f32 to vector<8x256xf32>
    %255 = arith.mulf %248, %254 : vector<8x256xf32>
    %256 = arith.addf %226, %255 : vector<8x256xf32>
    %c2_149 = arith.constant 2 : index
    %c8_150 = arith.constant 8 : index
    %257 = memref.load %arg3[%c2_149, %c8_150] : memref<7x16xf32, #tpu.memory_space<smem>>
    %258 = vector.broadcast %257 : f32 to vector<8x256xf32>
    %259 = arith.mulf %248, %258 : vector<8x256xf32>
    %260 = arith.addf %230, %259 : vector<8x256xf32>
    %c3_151 = arith.constant 3 : index
    %c8_152 = arith.constant 8 : index
    %261 = memref.load %arg3[%c3_151, %c8_152] : memref<7x16xf32, #tpu.memory_space<smem>>
    %262 = vector.broadcast %261 : f32 to vector<8x256xf32>
    %263 = arith.mulf %248, %262 : vector<8x256xf32>
    %264 = arith.addf %234, %263 : vector<8x256xf32>
    %c4_153 = arith.constant 4 : index
    %c8_154 = arith.constant 8 : index
    %265 = memref.load %arg3[%c4_153, %c8_154] : memref<7x16xf32, #tpu.memory_space<smem>>
    %266 = vector.broadcast %265 : f32 to vector<8x256xf32>
    %267 = arith.mulf %248, %266 : vector<8x256xf32>
    %268 = arith.addf %238, %267 : vector<8x256xf32>
    %c5_155 = arith.constant 5 : index
    %c8_156 = arith.constant 8 : index
    %269 = memref.load %arg3[%c5_155, %c8_156] : memref<7x16xf32, #tpu.memory_space<smem>>
    %270 = vector.broadcast %269 : f32 to vector<8x256xf32>
    %271 = arith.mulf %248, %270 : vector<8x256xf32>
    %272 = arith.addf %242, %271 : vector<8x256xf32>
    %c6_157 = arith.constant 6 : index
    %c8_158 = arith.constant 8 : index
    %273 = memref.load %arg3[%c6_157, %c8_158] : memref<7x16xf32, #tpu.memory_space<smem>>
    %274 = vector.broadcast %273 : f32 to vector<8x256xf32>
    %275 = arith.mulf %248, %274 : vector<8x256xf32>
    %276 = arith.addf %246, %275 : vector<8x256xf32>
    %c0_159 = arith.constant 0 : index
    %c9 = arith.constant 9 : index
    %c0_160 = arith.constant 0 : index
    %c0_161 = arith.constant 0 : index
    %277 = vector.load %arg2[%c0_159, %c9, %c0_160, %c0_161] : memref<1x16x8x256xf32, #tpu.memory_space<vmem>>, vector<1x1x8x256xf32>
    %278 = vector.shape_cast %277 : vector<1x1x8x256xf32> to vector<8x256xf32>
    %c0_162 = arith.constant 0 : index
    %c9_163 = arith.constant 9 : index
    %279 = memref.load %arg3[%c0_162, %c9_163] : memref<7x16xf32, #tpu.memory_space<smem>>
    %280 = vector.broadcast %279 : f32 to vector<8x256xf32>
    %281 = arith.mulf %278, %280 : vector<8x256xf32>
    %282 = arith.addf %252, %281 : vector<8x256xf32>
    %c1_164 = arith.constant 1 : index
    %c9_165 = arith.constant 9 : index
    %283 = memref.load %arg3[%c1_164, %c9_165] : memref<7x16xf32, #tpu.memory_space<smem>>
    %284 = vector.broadcast %283 : f32 to vector<8x256xf32>
    %285 = arith.mulf %278, %284 : vector<8x256xf32>
    %286 = arith.addf %256, %285 : vector<8x256xf32>
    %c2_166 = arith.constant 2 : index
    %c9_167 = arith.constant 9 : index
    %287 = memref.load %arg3[%c2_166, %c9_167] : memref<7x16xf32, #tpu.memory_space<smem>>
    %288 = vector.broadcast %287 : f32 to vector<8x256xf32>
    %289 = arith.mulf %278, %288 : vector<8x256xf32>
    %290 = arith.addf %260, %289 : vector<8x256xf32>
    %c3_168 = arith.constant 3 : index
    %c9_169 = arith.constant 9 : index
    %291 = memref.load %arg3[%c3_168, %c9_169] : memref<7x16xf32, #tpu.memory_space<smem>>
    %292 = vector.broadcast %291 : f32 to vector<8x256xf32>
    %293 = arith.mulf %278, %292 : vector<8x256xf32>
    %294 = arith.addf %264, %293 : vector<8x256xf32>
    %c4_170 = arith.constant 4 : index
    %c9_171 = arith.constant 9 : index
    %295 = memref.load %arg3[%c4_170, %c9_171] : memref<7x16xf32, #tpu.memory_space<smem>>
    %296 = vector.broadcast %295 : f32 to vector<8x256xf32>
    %297 = arith.mulf %278, %296 : vector<8x256xf32>
    %298 = arith.addf %268, %297 : vector<8x256xf32>
    %c5_172 = arith.constant 5 : index
    %c9_173 = arith.constant 9 : index
    %299 = memref.load %arg3[%c5_172, %c9_173] : memref<7x16xf32, #tpu.memory_space<smem>>
    %300 = vector.broadcast %299 : f32 to vector<8x256xf32>
    %301 = arith.mulf %278, %300 : vector<8x256xf32>
    %302 = arith.addf %272, %301 : vector<8x256xf32>
    %c6_174 = arith.constant 6 : index
    %c9_175 = arith.constant 9 : index
    %303 = memref.load %arg3[%c6_174, %c9_175] : memref<7x16xf32, #tpu.memory_space<smem>>
    %304 = vector.broadcast %303 : f32 to vector<8x256xf32>
    %305 = arith.mulf %278, %304 : vector<8x256xf32>
    %306 = arith.addf %276, %305 : vector<8x256xf32>
    %c0_176 = arith.constant 0 : index
    %c10 = arith.constant 10 : index
    %c0_177 = arith.constant 0 : index
    %c0_178 = arith.constant 0 : index
    %307 = vector.load %arg2[%c0_176, %c10, %c0_177, %c0_178] : memref<1x16x8x256xf32, #tpu.memory_space<vmem>>, vector<1x1x8x256xf32>
    %308 = vector.shape_cast %307 : vector<1x1x8x256xf32> to vector<8x256xf32>
    %c0_179 = arith.constant 0 : index
    %c10_180 = arith.constant 10 : index
    %309 = memref.load %arg3[%c0_179, %c10_180] : memref<7x16xf32, #tpu.memory_space<smem>>
    %310 = vector.broadcast %309 : f32 to vector<8x256xf32>
    %311 = arith.mulf %308, %310 : vector<8x256xf32>
    %312 = arith.addf %282, %311 : vector<8x256xf32>
    %c1_181 = arith.constant 1 : index
    %c10_182 = arith.constant 10 : index
    %313 = memref.load %arg3[%c1_181, %c10_182] : memref<7x16xf32, #tpu.memory_space<smem>>
    %314 = vector.broadcast %313 : f32 to vector<8x256xf32>
    %315 = arith.mulf %308, %314 : vector<8x256xf32>
    %316 = arith.addf %286, %315 : vector<8x256xf32>
    %c2_183 = arith.constant 2 : index
    %c10_184 = arith.constant 10 : index
    %317 = memref.load %arg3[%c2_183, %c10_184] : memref<7x16xf32, #tpu.memory_space<smem>>
    %318 = vector.broadcast %317 : f32 to vector<8x256xf32>
    %319 = arith.mulf %308, %318 : vector<8x256xf32>
    %320 = arith.addf %290, %319 : vector<8x256xf32>
    %c3_185 = arith.constant 3 : index
    %c10_186 = arith.constant 10 : index
    %321 = memref.load %arg3[%c3_185, %c10_186] : memref<7x16xf32, #tpu.memory_space<smem>>
    %322 = vector.broadcast %321 : f32 to vector<8x256xf32>
    %323 = arith.mulf %308, %322 : vector<8x256xf32>
    %324 = arith.addf %294, %323 : vector<8x256xf32>
    %c4_187 = arith.constant 4 : index
    %c10_188 = arith.constant 10 : index
    %325 = memref.load %arg3[%c4_187, %c10_188] : memref<7x16xf32, #tpu.memory_space<smem>>
    %326 = vector.broadcast %325 : f32 to vector<8x256xf32>
    %327 = arith.mulf %308, %326 : vector<8x256xf32>
    %328 = arith.addf %298, %327 : vector<8x256xf32>
    %c5_189 = arith.constant 5 : index
    %c10_190 = arith.constant 10 : index
    %329 = memref.load %arg3[%c5_189, %c10_190] : memref<7x16xf32, #tpu.memory_space<smem>>
    %330 = vector.broadcast %329 : f32 to vector<8x256xf32>
    %331 = arith.mulf %308, %330 : vector<8x256xf32>
    %332 = arith.addf %302, %331 : vector<8x256xf32>
    %c6_191 = arith.constant 6 : index
    %c10_192 = arith.constant 10 : index
    %333 = memref.load %arg3[%c6_191, %c10_192] : memref<7x16xf32, #tpu.memory_space<smem>>
    %334 = vector.broadcast %333 : f32 to vector<8x256xf32>
    %335 = arith.mulf %308, %334 : vector<8x256xf32>
    %336 = arith.addf %306, %335 : vector<8x256xf32>
    %c0_193 = arith.constant 0 : index
    %c11 = arith.constant 11 : index
    %c0_194 = arith.constant 0 : index
    %c0_195 = arith.constant 0 : index
    %337 = vector.load %arg2[%c0_193, %c11, %c0_194, %c0_195] : memref<1x16x8x256xf32, #tpu.memory_space<vmem>>, vector<1x1x8x256xf32>
    %338 = vector.shape_cast %337 : vector<1x1x8x256xf32> to vector<8x256xf32>
    %c0_196 = arith.constant 0 : index
    %c11_197 = arith.constant 11 : index
    %339 = memref.load %arg3[%c0_196, %c11_197] : memref<7x16xf32, #tpu.memory_space<smem>>
    %340 = vector.broadcast %339 : f32 to vector<8x256xf32>
    %341 = arith.mulf %338, %340 : vector<8x256xf32>
    %342 = arith.addf %312, %341 : vector<8x256xf32>
    %c1_198 = arith.constant 1 : index
    %c11_199 = arith.constant 11 : index
    %343 = memref.load %arg3[%c1_198, %c11_199] : memref<7x16xf32, #tpu.memory_space<smem>>
    %344 = vector.broadcast %343 : f32 to vector<8x256xf32>
    %345 = arith.mulf %338, %344 : vector<8x256xf32>
    %346 = arith.addf %316, %345 : vector<8x256xf32>
    %c2_200 = arith.constant 2 : index
    %c11_201 = arith.constant 11 : index
    %347 = memref.load %arg3[%c2_200, %c11_201] : memref<7x16xf32, #tpu.memory_space<smem>>
    %348 = vector.broadcast %347 : f32 to vector<8x256xf32>
    %349 = arith.mulf %338, %348 : vector<8x256xf32>
    %350 = arith.addf %320, %349 : vector<8x256xf32>
    %c3_202 = arith.constant 3 : index
    %c11_203 = arith.constant 11 : index
    %351 = memref.load %arg3[%c3_202, %c11_203] : memref<7x16xf32, #tpu.memory_space<smem>>
    %352 = vector.broadcast %351 : f32 to vector<8x256xf32>
    %353 = arith.mulf %338, %352 : vector<8x256xf32>
    %354 = arith.addf %324, %353 : vector<8x256xf32>
    %c4_204 = arith.constant 4 : index
    %c11_205 = arith.constant 11 : index
    %355 = memref.load %arg3[%c4_204, %c11_205] : memref<7x16xf32, #tpu.memory_space<smem>>
    %356 = vector.broadcast %355 : f32 to vector<8x256xf32>
    %357 = arith.mulf %338, %356 : vector<8x256xf32>
    %358 = arith.addf %328, %357 : vector<8x256xf32>
    %c5_206 = arith.constant 5 : index
    %c11_207 = arith.constant 11 : index
    %359 = memref.load %arg3[%c5_206, %c11_207] : memref<7x16xf32, #tpu.memory_space<smem>>
    %360 = vector.broadcast %359 : f32 to vector<8x256xf32>
    %361 = arith.mulf %338, %360 : vector<8x256xf32>
    %362 = arith.addf %332, %361 : vector<8x256xf32>
    %c6_208 = arith.constant 6 : index
    %c11_209 = arith.constant 11 : index
    %363 = memref.load %arg3[%c6_208, %c11_209] : memref<7x16xf32, #tpu.memory_space<smem>>
    %364 = vector.broadcast %363 : f32 to vector<8x256xf32>
    %365 = arith.mulf %338, %364 : vector<8x256xf32>
    %366 = arith.addf %336, %365 : vector<8x256xf32>
    %c0_210 = arith.constant 0 : index
    %c12 = arith.constant 12 : index
    %c0_211 = arith.constant 0 : index
    %c0_212 = arith.constant 0 : index
    %367 = vector.load %arg2[%c0_210, %c12, %c0_211, %c0_212] : memref<1x16x8x256xf32, #tpu.memory_space<vmem>>, vector<1x1x8x256xf32>
    %368 = vector.shape_cast %367 : vector<1x1x8x256xf32> to vector<8x256xf32>
    %c0_213 = arith.constant 0 : index
    %c12_214 = arith.constant 12 : index
    %369 = memref.load %arg3[%c0_213, %c12_214] : memref<7x16xf32, #tpu.memory_space<smem>>
    %370 = vector.broadcast %369 : f32 to vector<8x256xf32>
    %371 = arith.mulf %368, %370 : vector<8x256xf32>
    %372 = arith.addf %342, %371 : vector<8x256xf32>
    %c1_215 = arith.constant 1 : index
    %c12_216 = arith.constant 12 : index
    %373 = memref.load %arg3[%c1_215, %c12_216] : memref<7x16xf32, #tpu.memory_space<smem>>
    %374 = vector.broadcast %373 : f32 to vector<8x256xf32>
    %375 = arith.mulf %368, %374 : vector<8x256xf32>
    %376 = arith.addf %346, %375 : vector<8x256xf32>
    %c2_217 = arith.constant 2 : index
    %c12_218 = arith.constant 12 : index
    %377 = memref.load %arg3[%c2_217, %c12_218] : memref<7x16xf32, #tpu.memory_space<smem>>
    %378 = vector.broadcast %377 : f32 to vector<8x256xf32>
    %379 = arith.mulf %368, %378 : vector<8x256xf32>
    %380 = arith.addf %350, %379 : vector<8x256xf32>
    %c3_219 = arith.constant 3 : index
    %c12_220 = arith.constant 12 : index
    %381 = memref.load %arg3[%c3_219, %c12_220] : memref<7x16xf32, #tpu.memory_space<smem>>
    %382 = vector.broadcast %381 : f32 to vector<8x256xf32>
    %383 = arith.mulf %368, %382 : vector<8x256xf32>
    %384 = arith.addf %354, %383 : vector<8x256xf32>
    %c4_221 = arith.constant 4 : index
    %c12_222 = arith.constant 12 : index
    %385 = memref.load %arg3[%c4_221, %c12_222] : memref<7x16xf32, #tpu.memory_space<smem>>
    %386 = vector.broadcast %385 : f32 to vector<8x256xf32>
    %387 = arith.mulf %368, %386 : vector<8x256xf32>
    %388 = arith.addf %358, %387 : vector<8x256xf32>
    %c5_223 = arith.constant 5 : index
    %c12_224 = arith.constant 12 : index
    %389 = memref.load %arg3[%c5_223, %c12_224] : memref<7x16xf32, #tpu.memory_space<smem>>
    %390 = vector.broadcast %389 : f32 to vector<8x256xf32>
    %391 = arith.mulf %368, %390 : vector<8x256xf32>
    %392 = arith.addf %362, %391 : vector<8x256xf32>
    %c6_225 = arith.constant 6 : index
    %c12_226 = arith.constant 12 : index
    %393 = memref.load %arg3[%c6_225, %c12_226] : memref<7x16xf32, #tpu.memory_space<smem>>
    %394 = vector.broadcast %393 : f32 to vector<8x256xf32>
    %395 = arith.mulf %368, %394 : vector<8x256xf32>
    %396 = arith.addf %366, %395 : vector<8x256xf32>
    %c0_227 = arith.constant 0 : index
    %c13 = arith.constant 13 : index
    %c0_228 = arith.constant 0 : index
    %c0_229 = arith.constant 0 : index
    %397 = vector.load %arg2[%c0_227, %c13, %c0_228, %c0_229] : memref<1x16x8x256xf32, #tpu.memory_space<vmem>>, vector<1x1x8x256xf32>
    %398 = vector.shape_cast %397 : vector<1x1x8x256xf32> to vector<8x256xf32>
    %c0_230 = arith.constant 0 : index
    %c13_231 = arith.constant 13 : index
    %399 = memref.load %arg3[%c0_230, %c13_231] : memref<7x16xf32, #tpu.memory_space<smem>>
    %400 = vector.broadcast %399 : f32 to vector<8x256xf32>
    %401 = arith.mulf %398, %400 : vector<8x256xf32>
    %402 = arith.addf %372, %401 : vector<8x256xf32>
    %c1_232 = arith.constant 1 : index
    %c13_233 = arith.constant 13 : index
    %403 = memref.load %arg3[%c1_232, %c13_233] : memref<7x16xf32, #tpu.memory_space<smem>>
    %404 = vector.broadcast %403 : f32 to vector<8x256xf32>
    %405 = arith.mulf %398, %404 : vector<8x256xf32>
    %406 = arith.addf %376, %405 : vector<8x256xf32>
    %c2_234 = arith.constant 2 : index
    %c13_235 = arith.constant 13 : index
    %407 = memref.load %arg3[%c2_234, %c13_235] : memref<7x16xf32, #tpu.memory_space<smem>>
    %408 = vector.broadcast %407 : f32 to vector<8x256xf32>
    %409 = arith.mulf %398, %408 : vector<8x256xf32>
    %410 = arith.addf %380, %409 : vector<8x256xf32>
    %c3_236 = arith.constant 3 : index
    %c13_237 = arith.constant 13 : index
    %411 = memref.load %arg3[%c3_236, %c13_237] : memref<7x16xf32, #tpu.memory_space<smem>>
    %412 = vector.broadcast %411 : f32 to vector<8x256xf32>
    %413 = arith.mulf %398, %412 : vector<8x256xf32>
    %414 = arith.addf %384, %413 : vector<8x256xf32>
    %c4_238 = arith.constant 4 : index
    %c13_239 = arith.constant 13 : index
    %415 = memref.load %arg3[%c4_238, %c13_239] : memref<7x16xf32, #tpu.memory_space<smem>>
    %416 = vector.broadcast %415 : f32 to vector<8x256xf32>
    %417 = arith.mulf %398, %416 : vector<8x256xf32>
    %418 = arith.addf %388, %417 : vector<8x256xf32>
    %c5_240 = arith.constant 5 : index
    %c13_241 = arith.constant 13 : index
    %419 = memref.load %arg3[%c5_240, %c13_241] : memref<7x16xf32, #tpu.memory_space<smem>>
    %420 = vector.broadcast %419 : f32 to vector<8x256xf32>
    %421 = arith.mulf %398, %420 : vector<8x256xf32>
    %422 = arith.addf %392, %421 : vector<8x256xf32>
    %c6_242 = arith.constant 6 : index
    %c13_243 = arith.constant 13 : index
    %423 = memref.load %arg3[%c6_242, %c13_243] : memref<7x16xf32, #tpu.memory_space<smem>>
    %424 = vector.broadcast %423 : f32 to vector<8x256xf32>
    %425 = arith.mulf %398, %424 : vector<8x256xf32>
    %426 = arith.addf %396, %425 : vector<8x256xf32>
    %c0_244 = arith.constant 0 : index
    %c14 = arith.constant 14 : index
    %c0_245 = arith.constant 0 : index
    %c0_246 = arith.constant 0 : index
    %427 = vector.load %arg2[%c0_244, %c14, %c0_245, %c0_246] : memref<1x16x8x256xf32, #tpu.memory_space<vmem>>, vector<1x1x8x256xf32>
    %428 = vector.shape_cast %427 : vector<1x1x8x256xf32> to vector<8x256xf32>
    %c0_247 = arith.constant 0 : index
    %c14_248 = arith.constant 14 : index
    %429 = memref.load %arg3[%c0_247, %c14_248] : memref<7x16xf32, #tpu.memory_space<smem>>
    %430 = vector.broadcast %429 : f32 to vector<8x256xf32>
    %431 = arith.mulf %428, %430 : vector<8x256xf32>
    %432 = arith.addf %402, %431 : vector<8x256xf32>
    %c1_249 = arith.constant 1 : index
    %c14_250 = arith.constant 14 : index
    %433 = memref.load %arg3[%c1_249, %c14_250] : memref<7x16xf32, #tpu.memory_space<smem>>
    %434 = vector.broadcast %433 : f32 to vector<8x256xf32>
    %435 = arith.mulf %428, %434 : vector<8x256xf32>
    %436 = arith.addf %406, %435 : vector<8x256xf32>
    %c2_251 = arith.constant 2 : index
    %c14_252 = arith.constant 14 : index
    %437 = memref.load %arg3[%c2_251, %c14_252] : memref<7x16xf32, #tpu.memory_space<smem>>
    %438 = vector.broadcast %437 : f32 to vector<8x256xf32>
    %439 = arith.mulf %428, %438 : vector<8x256xf32>
    %440 = arith.addf %410, %439 : vector<8x256xf32>
    %c3_253 = arith.constant 3 : index
    %c14_254 = arith.constant 14 : index
    %441 = memref.load %arg3[%c3_253, %c14_254] : memref<7x16xf32, #tpu.memory_space<smem>>
    %442 = vector.broadcast %441 : f32 to vector<8x256xf32>
    %443 = arith.mulf %428, %442 : vector<8x256xf32>
    %444 = arith.addf %414, %443 : vector<8x256xf32>
    %c4_255 = arith.constant 4 : index
    %c14_256 = arith.constant 14 : index
    %445 = memref.load %arg3[%c4_255, %c14_256] : memref<7x16xf32, #tpu.memory_space<smem>>
    %446 = vector.broadcast %445 : f32 to vector<8x256xf32>
    %447 = arith.mulf %428, %446 : vector<8x256xf32>
    %448 = arith.addf %418, %447 : vector<8x256xf32>
    %c5_257 = arith.constant 5 : index
    %c14_258 = arith.constant 14 : index
    %449 = memref.load %arg3[%c5_257, %c14_258] : memref<7x16xf32, #tpu.memory_space<smem>>
    %450 = vector.broadcast %449 : f32 to vector<8x256xf32>
    %451 = arith.mulf %428, %450 : vector<8x256xf32>
    %452 = arith.addf %422, %451 : vector<8x256xf32>
    %c6_259 = arith.constant 6 : index
    %c14_260 = arith.constant 14 : index
    %453 = memref.load %arg3[%c6_259, %c14_260] : memref<7x16xf32, #tpu.memory_space<smem>>
    %454 = vector.broadcast %453 : f32 to vector<8x256xf32>
    %455 = arith.mulf %428, %454 : vector<8x256xf32>
    %456 = arith.addf %426, %455 : vector<8x256xf32>
    %c0_261 = arith.constant 0 : index
    %c15 = arith.constant 15 : index
    %c0_262 = arith.constant 0 : index
    %c0_263 = arith.constant 0 : index
    %457 = vector.load %arg2[%c0_261, %c15, %c0_262, %c0_263] : memref<1x16x8x256xf32, #tpu.memory_space<vmem>>, vector<1x1x8x256xf32>
    %458 = vector.shape_cast %457 : vector<1x1x8x256xf32> to vector<8x256xf32>
    %c0_264 = arith.constant 0 : index
    %c15_265 = arith.constant 15 : index
    %459 = memref.load %arg3[%c0_264, %c15_265] : memref<7x16xf32, #tpu.memory_space<smem>>
    %460 = vector.broadcast %459 : f32 to vector<8x256xf32>
    %461 = arith.mulf %458, %460 : vector<8x256xf32>
    %462 = arith.addf %432, %461 : vector<8x256xf32>
    %c1_266 = arith.constant 1 : index
    %c15_267 = arith.constant 15 : index
    %463 = memref.load %arg3[%c1_266, %c15_267] : memref<7x16xf32, #tpu.memory_space<smem>>
    %464 = vector.broadcast %463 : f32 to vector<8x256xf32>
    %465 = arith.mulf %458, %464 : vector<8x256xf32>
    %466 = arith.addf %436, %465 : vector<8x256xf32>
    %c2_268 = arith.constant 2 : index
    %c15_269 = arith.constant 15 : index
    %467 = memref.load %arg3[%c2_268, %c15_269] : memref<7x16xf32, #tpu.memory_space<smem>>
    %468 = vector.broadcast %467 : f32 to vector<8x256xf32>
    %469 = arith.mulf %458, %468 : vector<8x256xf32>
    %470 = arith.addf %440, %469 : vector<8x256xf32>
    %c3_270 = arith.constant 3 : index
    %c15_271 = arith.constant 15 : index
    %471 = memref.load %arg3[%c3_270, %c15_271] : memref<7x16xf32, #tpu.memory_space<smem>>
    %472 = vector.broadcast %471 : f32 to vector<8x256xf32>
    %473 = arith.mulf %458, %472 : vector<8x256xf32>
    %474 = arith.addf %444, %473 : vector<8x256xf32>
    %c4_272 = arith.constant 4 : index
    %c15_273 = arith.constant 15 : index
    %475 = memref.load %arg3[%c4_272, %c15_273] : memref<7x16xf32, #tpu.memory_space<smem>>
    %476 = vector.broadcast %475 : f32 to vector<8x256xf32>
    %477 = arith.mulf %458, %476 : vector<8x256xf32>
    %478 = arith.addf %448, %477 : vector<8x256xf32>
    %c5_274 = arith.constant 5 : index
    %c15_275 = arith.constant 15 : index
    %479 = memref.load %arg3[%c5_274, %c15_275] : memref<7x16xf32, #tpu.memory_space<smem>>
    %480 = vector.broadcast %479 : f32 to vector<8x256xf32>
    %481 = arith.mulf %458, %480 : vector<8x256xf32>
    %482 = arith.addf %452, %481 : vector<8x256xf32>
    %c6_276 = arith.constant 6 : index
    %c15_277 = arith.constant 15 : index
    %483 = memref.load %arg3[%c6_276, %c15_277] : memref<7x16xf32, #tpu.memory_space<smem>>
    %484 = vector.broadcast %483 : f32 to vector<8x256xf32>
    %485 = arith.mulf %458, %484 : vector<8x256xf32>
    %486 = arith.addf %456, %485 : vector<8x256xf32>
    %c0_278 = arith.constant 0 : index
    %487 = memref.load %arg4[%c0_278] : memref<1xf32, #tpu.memory_space<smem>>
    %488 = vector.broadcast %487 : f32 to vector<8x256xf32>
    %489 = arith.addf %462, %488 : vector<8x256xf32>
    %490 = arith.negf %489 : vector<8x256xf32>
    %491 = math.exp %490 : vector<8x256xf32>
    %cst_279 = arith.constant 1.000000e+00 : f32
    %492 = vector.broadcast %cst_279 : f32 to vector<8x256xf32>
    %493 = arith.addf %492, %491 : vector<8x256xf32>
    %494 = arith.divf %492, %493 : vector<8x256xf32>
    %cst_280 = arith.constant 0.000000e+00 : f32
    %495 = vector.broadcast %cst_280 : f32 to vector<1x256xf32>
    %cst_281 = arith.constant 0.000000e+00 : f32
    %496 = vector.broadcast %cst_281 : f32 to vector<8x256xf32>
    %c0_282 = arith.constant 0 : index
    %497 = memref.load %arg7[%c0_282] : memref<1xf32, #tpu.memory_space<smem>>
    %498 = vector.broadcast %497 : f32 to vector<8x256xf32>
    %499 = arith.addf %496, %498 : vector<8x256xf32>
    %500 = vector.extract_strided_slice %466 {offsets = [0, 0], sizes = [7, 256], strides = [1, 1]} : vector<8x256xf32> to vector<7x256xf32>
    %501 = tpu.concatenate %495, %500 in 0 : vector<1x256xf32>, vector<7x256xf32> -> vector<8x256xf32>
    %502 = vector.extract_strided_slice %482 {offsets = [1, 0], sizes = [7, 256], strides = [1, 1]} : vector<8x256xf32> to vector<7x256xf32>
    %503 = tpu.concatenate %502, %495 in 0 : vector<7x256xf32>, vector<1x256xf32> -> vector<8x256xf32>
    %504 = arith.addf %501, %474 : vector<8x256xf32>
    %505 = arith.addf %504, %503 : vector<8x256xf32>
    %c0_283 = arith.constant 0 : index
    %506 = memref.load %arg5[%c0_283] : memref<2xf32, #tpu.memory_space<smem>>
    %507 = vector.broadcast %506 : f32 to vector<8x256xf32>
    %508 = arith.addf %505, %507 : vector<8x256xf32>
    %cst_284 = arith.constant 5.000000e-01 : f32
    %509 = vector.broadcast %cst_284 : f32 to vector<8x256xf32>
    %510 = arith.mulf %509, %508 : vector<8x256xf32>
    %cst_285 = arith.constant 0.707106769 : f32
    %511 = vector.broadcast %cst_285 : f32 to vector<8x256xf32>
    %512 = arith.mulf %508, %511 : vector<8x256xf32>
    %cst_286 = arith.constant 0.000000e+00 : f32
    %513 = vector.broadcast %cst_286 : f32 to vector<8x256xf32>
    %514 = arith.cmpf oge, %512, %513 : vector<8x256xf32>
    %cst_287 = arith.constant 1.000000e+00 : f32
    %cst_288 = arith.constant -1.000000e+00 : f32
    %515 = vector.broadcast %cst_287 : f32 to vector<8x256xf32>
    %516 = vector.broadcast %cst_288 : f32 to vector<8x256xf32>
    %517 = arith.select %514, %515, %516 : vector<8x256xi1>, vector<8x256xf32>
    %518 = math.absf %512 : vector<8x256xf32>
    %cst_289 = arith.constant 0.327591091 : f32
    %519 = vector.broadcast %cst_289 : f32 to vector<8x256xf32>
    %520 = arith.mulf %519, %518 : vector<8x256xf32>
    %cst_290 = arith.constant 1.000000e+00 : f32
    %521 = vector.broadcast %cst_290 : f32 to vector<8x256xf32>
    %522 = arith.addf %521, %520 : vector<8x256xf32>
    %523 = tpu.reciprocal %522 {approx = true} : vector<8x256xf32> -> vector<8x256xf32>
    %cst_291 = arith.constant 1.06140542 : f32
    %524 = vector.broadcast %cst_291 : f32 to vector<8x256xf32>
    %525 = arith.mulf %523, %524 : vector<8x256xf32>
    %cst_292 = arith.constant -1.45315206 : f32
    %526 = vector.broadcast %cst_292 : f32 to vector<8x256xf32>
    %527 = arith.addf %526, %525 : vector<8x256xf32>
    %528 = arith.mulf %523, %527 : vector<8x256xf32>
    %cst_293 = arith.constant 1.42141378 : f32
    %529 = vector.broadcast %cst_293 : f32 to vector<8x256xf32>
    %530 = arith.addf %529, %528 : vector<8x256xf32>
    %531 = arith.mulf %523, %530 : vector<8x256xf32>
    %cst_294 = arith.constant -0.284496725 : f32
    %532 = vector.broadcast %cst_294 : f32 to vector<8x256xf32>
    %533 = arith.addf %532, %531 : vector<8x256xf32>
    %534 = arith.mulf %523, %533 : vector<8x256xf32>
    %cst_295 = arith.constant 0.254829586 : f32
    %535 = vector.broadcast %cst_295 : f32 to vector<8x256xf32>
    %536 = arith.addf %535, %534 : vector<8x256xf32>
    %537 = arith.mulf %523, %536 : vector<8x256xf32>
    %cst_296 = arith.constant 0.000000e+00 : f32
    %538 = vector.broadcast %cst_296 : f32 to vector<8x256xf32>
    %539 = arith.subf %538, %518 : vector<8x256xf32>
    %540 = arith.mulf %539, %518 : vector<8x256xf32>
    %541 = math.exp %540 : vector<8x256xf32>
    %542 = arith.mulf %537, %541 : vector<8x256xf32>
    %cst_297 = arith.constant 1.000000e+00 : f32
    %543 = vector.broadcast %cst_297 : f32 to vector<8x256xf32>
    %544 = arith.subf %543, %542 : vector<8x256xf32>
    %545 = arith.mulf %517, %544 : vector<8x256xf32>
    %cst_298 = arith.constant 1.000000e+00 : f32
    %546 = vector.broadcast %cst_298 : f32 to vector<8x256xf32>
    %547 = arith.addf %546, %545 : vector<8x256xf32>
    %548 = arith.mulf %510, %547 : vector<8x256xf32>
    %c0_299 = arith.constant 0 : index
    %549 = memref.load %arg6[%c0_299] : memref<2xf32, #tpu.memory_space<smem>>
    %550 = vector.broadcast %549 : f32 to vector<8x256xf32>
    %551 = arith.mulf %548, %550 : vector<8x256xf32>
    %552 = arith.addf %499, %551 : vector<8x256xf32>
    %553 = vector.extract_strided_slice %470 {offsets = [0, 0], sizes = [7, 256], strides = [1, 1]} : vector<8x256xf32> to vector<7x256xf32>
    %554 = tpu.concatenate %495, %553 in 0 : vector<1x256xf32>, vector<7x256xf32> -> vector<8x256xf32>
    %555 = vector.extract_strided_slice %486 {offsets = [1, 0], sizes = [7, 256], strides = [1, 1]} : vector<8x256xf32> to vector<7x256xf32>
    %556 = tpu.concatenate %555, %495 in 0 : vector<7x256xf32>, vector<1x256xf32> -> vector<8x256xf32>
    %557 = arith.addf %554, %478 : vector<8x256xf32>
    %558 = arith.addf %557, %556 : vector<8x256xf32>
    %c1_300 = arith.constant 1 : index
    %559 = memref.load %arg5[%c1_300] : memref<2xf32, #tpu.memory_space<smem>>
    %560 = vector.broadcast %559 : f32 to vector<8x256xf32>
    %561 = arith.addf %558, %560 : vector<8x256xf32>
    %cst_301 = arith.constant 5.000000e-01 : f32
    %562 = vector.broadcast %cst_301 : f32 to vector<8x256xf32>
    %563 = arith.mulf %562, %561 : vector<8x256xf32>
    %cst_302 = arith.constant 0.707106769 : f32
    %564 = vector.broadcast %cst_302 : f32 to vector<8x256xf32>
    %565 = arith.mulf %561, %564 : vector<8x256xf32>
    %cst_303 = arith.constant 0.000000e+00 : f32
    %566 = vector.broadcast %cst_303 : f32 to vector<8x256xf32>
    %567 = arith.cmpf oge, %565, %566 : vector<8x256xf32>
    %cst_304 = arith.constant 1.000000e+00 : f32
    %cst_305 = arith.constant -1.000000e+00 : f32
    %568 = vector.broadcast %cst_304 : f32 to vector<8x256xf32>
    %569 = vector.broadcast %cst_305 : f32 to vector<8x256xf32>
    %570 = arith.select %567, %568, %569 : vector<8x256xi1>, vector<8x256xf32>
    %571 = math.absf %565 : vector<8x256xf32>
    %cst_306 = arith.constant 0.327591091 : f32
    %572 = vector.broadcast %cst_306 : f32 to vector<8x256xf32>
    %573 = arith.mulf %572, %571 : vector<8x256xf32>
    %cst_307 = arith.constant 1.000000e+00 : f32
    %574 = vector.broadcast %cst_307 : f32 to vector<8x256xf32>
    %575 = arith.addf %574, %573 : vector<8x256xf32>
    %576 = tpu.reciprocal %575 {approx = true} : vector<8x256xf32> -> vector<8x256xf32>
    %cst_308 = arith.constant 1.06140542 : f32
    %577 = vector.broadcast %cst_308 : f32 to vector<8x256xf32>
    %578 = arith.mulf %576, %577 : vector<8x256xf32>
    %cst_309 = arith.constant -1.45315206 : f32
    %579 = vector.broadcast %cst_309 : f32 to vector<8x256xf32>
    %580 = arith.addf %579, %578 : vector<8x256xf32>
    %581 = arith.mulf %576, %580 : vector<8x256xf32>
    %cst_310 = arith.constant 1.42141378 : f32
    %582 = vector.broadcast %cst_310 : f32 to vector<8x256xf32>
    %583 = arith.addf %582, %581 : vector<8x256xf32>
    %584 = arith.mulf %576, %583 : vector<8x256xf32>
    %cst_311 = arith.constant -0.284496725 : f32
    %585 = vector.broadcast %cst_311 : f32 to vector<8x256xf32>
    %586 = arith.addf %585, %584 : vector<8x256xf32>
    %587 = arith.mulf %576, %586 : vector<8x256xf32>
    %cst_312 = arith.constant 0.254829586 : f32
    %588 = vector.broadcast %cst_312 : f32 to vector<8x256xf32>
    %589 = arith.addf %588, %587 : vector<8x256xf32>
    %590 = arith.mulf %576, %589 : vector<8x256xf32>
    %cst_313 = arith.constant 0.000000e+00 : f32
    %591 = vector.broadcast %cst_313 : f32 to vector<8x256xf32>
    %592 = arith.subf %591, %571 : vector<8x256xf32>
    %593 = arith.mulf %592, %571 : vector<8x256xf32>
    %594 = math.exp %593 : vector<8x256xf32>
    %595 = arith.mulf %590, %594 : vector<8x256xf32>
    %cst_314 = arith.constant 1.000000e+00 : f32
    %596 = vector.broadcast %cst_314 : f32 to vector<8x256xf32>
    %597 = arith.subf %596, %595 : vector<8x256xf32>
    %598 = arith.mulf %570, %597 : vector<8x256xf32>
    %cst_315 = arith.constant 1.000000e+00 : f32
    %599 = vector.broadcast %cst_315 : f32 to vector<8x256xf32>
    %600 = arith.addf %599, %598 : vector<8x256xf32>
    %601 = arith.mulf %563, %600 : vector<8x256xf32>
    %c1_316 = arith.constant 1 : index
    %602 = memref.load %arg6[%c1_316] : memref<2xf32, #tpu.memory_space<smem>>
    %603 = vector.broadcast %602 : f32 to vector<8x256xf32>
    %604 = arith.mulf %601, %603 : vector<8x256xf32>
    %605 = arith.addf %552, %604 : vector<8x256xf32>
    %606 = arith.negf %605 : vector<8x256xf32>
    %607 = math.exp %606 : vector<8x256xf32>
    %cst_317 = arith.constant 1.000000e+00 : f32
    %608 = vector.broadcast %cst_317 : f32 to vector<8x256xf32>
    %609 = arith.addf %608, %607 : vector<8x256xf32>
    %610 = arith.divf %608, %609 : vector<8x256xf32>
    %611 = arith.mulf %494, %610 : vector<8x256xf32>
    %c0_318 = arith.constant 0 : index
    %c0_319 = arith.constant 0 : index
    %c0_320 = arith.constant 0 : index
    %c0_321 = arith.constant 0 : index
    %612 = vector.load %arg2[%c0_318, %c0_319, %c0_320, %c0_321] : memref<1x16x8x256xf32, #tpu.memory_space<vmem>>, vector<1x1x8x256xf32>
    %613 = vector.shape_cast %612 : vector<1x1x8x256xf32> to vector<8x256xf32>
    %614 = arith.mulf %613, %611 : vector<8x256xf32>
    %c0_322 = arith.constant 0 : index
    %c0_323 = arith.constant 0 : index
    %c0_324 = arith.constant 0 : index
    %c0_325 = arith.constant 0 : index
    %615 = vector.load %arg8[%c0_322, %c0_323, %c0_324, %c0_325] : memref<1x16x8x256xf32, #tpu.memory_space<vmem>>, vector<1x1x8x256xf32>
    %616 = vector.shape_cast %615 : vector<1x1x8x256xf32> to vector<8x256xf32>
    %617 = vector.shape_cast %614 : vector<8x256xf32> to vector<1x1x8x256xf32>
    tpu.vector_store %arg8[%c0_322, %c0_323, %c0_324, %c0_325], %617 {strides = array<i32>} : memref<1x16x8x256xf32, #tpu.memory_space<vmem>>, vector<1x1x8x256xf32>,
    %c0_326 = arith.constant 0 : index
    %c1_327 = arith.constant 1 : index
    %c0_328 = arith.constant 0 : index
    %c0_329 = arith.constant 0 : index
    %618 = vector.load %arg2[%c0_326, %c1_327, %c0_328, %c0_329] : memref<1x16x8x256xf32, #tpu.memory_space<vmem>>, vector<1x1x8x256xf32>
    %619 = vector.shape_cast %618 : vector<1x1x8x256xf32> to vector<8x256xf32>
    %620 = arith.mulf %619, %611 : vector<8x256xf32>
    %c0_330 = arith.constant 0 : index
    %c1_331 = arith.constant 1 : index
    %c0_332 = arith.constant 0 : index
    %c0_333 = arith.constant 0 : index
    %621 = vector.load %arg8[%c0_330, %c1_331, %c0_332, %c0_333] : memref<1x16x8x256xf32, #tpu.memory_space<vmem>>, vector<1x1x8x256xf32>
    %622 = vector.shape_cast %621 : vector<1x1x8x256xf32> to vector<8x256xf32>
    %623 = vector.shape_cast %620 : vector<8x256xf32> to vector<1x1x8x256xf32>
    tpu.vector_store %arg8[%c0_330, %c1_331, %c0_332, %c0_333], %623 {strides = array<i32>} : memref<1x16x8x256xf32, #tpu.memory_space<vmem>>, vector<1x1x8x256xf32>,
    %c0_334 = arith.constant 0 : index
    %c2_335 = arith.constant 2 : index
    %c0_336 = arith.constant 0 : index
    %c0_337 = arith.constant 0 : index
    %624 = vector.load %arg2[%c0_334, %c2_335, %c0_336, %c0_337] : memref<1x16x8x256xf32, #tpu.memory_space<vmem>>, vector<1x1x8x256xf32>
    %625 = vector.shape_cast %624 : vector<1x1x8x256xf32> to vector<8x256xf32>
    %626 = arith.mulf %625, %611 : vector<8x256xf32>
    %c0_338 = arith.constant 0 : index
    %c2_339 = arith.constant 2 : index
    %c0_340 = arith.constant 0 : index
    %c0_341 = arith.constant 0 : index
    %627 = vector.load %arg8[%c0_338, %c2_339, %c0_340, %c0_341] : memref<1x16x8x256xf32, #tpu.memory_space<vmem>>, vector<1x1x8x256xf32>
    %628 = vector.shape_cast %627 : vector<1x1x8x256xf32> to vector<8x256xf32>
    %629 = vector.shape_cast %626 : vector<8x256xf32> to vector<1x1x8x256xf32>
    tpu.vector_store %arg8[%c0_338, %c2_339, %c0_340, %c0_341], %629 {strides = array<i32>} : memref<1x16x8x256xf32, #tpu.memory_space<vmem>>, vector<1x1x8x256xf32>,
    %c0_342 = arith.constant 0 : index
    %c3_343 = arith.constant 3 : index
    %c0_344 = arith.constant 0 : index
    %c0_345 = arith.constant 0 : index
    %630 = vector.load %arg2[%c0_342, %c3_343, %c0_344, %c0_345] : memref<1x16x8x256xf32, #tpu.memory_space<vmem>>, vector<1x1x8x256xf32>
    %631 = vector.shape_cast %630 : vector<1x1x8x256xf32> to vector<8x256xf32>
    %632 = arith.mulf %631, %611 : vector<8x256xf32>
    %c0_346 = arith.constant 0 : index
    %c3_347 = arith.constant 3 : index
    %c0_348 = arith.constant 0 : index
    %c0_349 = arith.constant 0 : index
    %633 = vector.load %arg8[%c0_346, %c3_347, %c0_348, %c0_349] : memref<1x16x8x256xf32, #tpu.memory_space<vmem>>, vector<1x1x8x256xf32>
    %634 = vector.shape_cast %633 : vector<1x1x8x256xf32> to vector<8x256xf32>
    %635 = vector.shape_cast %632 : vector<8x256xf32> to vector<1x1x8x256xf32>
    tpu.vector_store %arg8[%c0_346, %c3_347, %c0_348, %c0_349], %635 {strides = array<i32>} : memref<1x16x8x256xf32, #tpu.memory_space<vmem>>, vector<1x1x8x256xf32>,
    %c0_350 = arith.constant 0 : index
    %c4_351 = arith.constant 4 : index
    %c0_352 = arith.constant 0 : index
    %c0_353 = arith.constant 0 : index
    %636 = vector.load %arg2[%c0_350, %c4_351, %c0_352, %c0_353] : memref<1x16x8x256xf32, #tpu.memory_space<vmem>>, vector<1x1x8x256xf32>
    %637 = vector.shape_cast %636 : vector<1x1x8x256xf32> to vector<8x256xf32>
    %638 = arith.mulf %637, %611 : vector<8x256xf32>
    %c0_354 = arith.constant 0 : index
    %c4_355 = arith.constant 4 : index
    %c0_356 = arith.constant 0 : index
    %c0_357 = arith.constant 0 : index
    %639 = vector.load %arg8[%c0_354, %c4_355, %c0_356, %c0_357] : memref<1x16x8x256xf32, #tpu.memory_space<vmem>>, vector<1x1x8x256xf32>
    %640 = vector.shape_cast %639 : vector<1x1x8x256xf32> to vector<8x256xf32>
    %641 = vector.shape_cast %638 : vector<8x256xf32> to vector<1x1x8x256xf32>
    tpu.vector_store %arg8[%c0_354, %c4_355, %c0_356, %c0_357], %641 {strides = array<i32>} : memref<1x16x8x256xf32, #tpu.memory_space<vmem>>, vector<1x1x8x256xf32>,
    %c0_358 = arith.constant 0 : index
    %c5_359 = arith.constant 5 : index
    %c0_360 = arith.constant 0 : index
    %c0_361 = arith.constant 0 : index
    %642 = vector.load %arg2[%c0_358, %c5_359, %c0_360, %c0_361] : memref<1x16x8x256xf32, #tpu.memory_space<vmem>>, vector<1x1x8x256xf32>
    %643 = vector.shape_cast %642 : vector<1x1x8x256xf32> to vector<8x256xf32>
    %644 = arith.mulf %643, %611 : vector<8x256xf32>
    %c0_362 = arith.constant 0 : index
    %c5_363 = arith.constant 5 : index
    %c0_364 = arith.constant 0 : index
    %c0_365 = arith.constant 0 : index
    %645 = vector.load %arg8[%c0_362, %c5_363, %c0_364, %c0_365] : memref<1x16x8x256xf32, #tpu.memory_space<vmem>>, vector<1x1x8x256xf32>
    %646 = vector.shape_cast %645 : vector<1x1x8x256xf32> to vector<8x256xf32>
    %647 = vector.shape_cast %644 : vector<8x256xf32> to vector<1x1x8x256xf32>
    tpu.vector_store %arg8[%c0_362, %c5_363, %c0_364, %c0_365], %647 {strides = array<i32>} : memref<1x16x8x256xf32, #tpu.memory_space<vmem>>, vector<1x1x8x256xf32>,
    %c0_366 = arith.constant 0 : index
    %c6_367 = arith.constant 6 : index
    %c0_368 = arith.constant 0 : index
    %c0_369 = arith.constant 0 : index
    %648 = vector.load %arg2[%c0_366, %c6_367, %c0_368, %c0_369] : memref<1x16x8x256xf32, #tpu.memory_space<vmem>>, vector<1x1x8x256xf32>
    %649 = vector.shape_cast %648 : vector<1x1x8x256xf32> to vector<8x256xf32>
    %650 = arith.mulf %649, %611 : vector<8x256xf32>
    %c0_370 = arith.constant 0 : index
    %c6_371 = arith.constant 6 : index
    %c0_372 = arith.constant 0 : index
    %c0_373 = arith.constant 0 : index
    %651 = vector.load %arg8[%c0_370, %c6_371, %c0_372, %c0_373] : memref<1x16x8x256xf32, #tpu.memory_space<vmem>>, vector<1x1x8x256xf32>
    %652 = vector.shape_cast %651 : vector<1x1x8x256xf32> to vector<8x256xf32>
    %653 = vector.shape_cast %650 : vector<8x256xf32> to vector<1x1x8x256xf32>
    tpu.vector_store %arg8[%c0_370, %c6_371, %c0_372, %c0_373], %653 {strides = array<i32>} : memref<1x16x8x256xf32, #tpu.memory_space<vmem>>, vector<1x1x8x256xf32>,
    %c0_374 = arith.constant 0 : index
    %c7_375 = arith.constant 7 : index
    %c0_376 = arith.constant 0 : index
    %c0_377 = arith.constant 0 : index
    %654 = vector.load %arg2[%c0_374, %c7_375, %c0_376, %c0_377] : memref<1x16x8x256xf32, #tpu.memory_space<vmem>>, vector<1x1x8x256xf32>
    %655 = vector.shape_cast %654 : vector<1x1x8x256xf32> to vector<8x256xf32>
    %656 = arith.mulf %655, %611 : vector<8x256xf32>
    %c0_378 = arith.constant 0 : index
    %c7_379 = arith.constant 7 : index
    %c0_380 = arith.constant 0 : index
    %c0_381 = arith.constant 0 : index
    %657 = vector.load %arg8[%c0_378, %c7_379, %c0_380, %c0_381] : memref<1x16x8x256xf32, #tpu.memory_space<vmem>>, vector<1x1x8x256xf32>
    %658 = vector.shape_cast %657 : vector<1x1x8x256xf32> to vector<8x256xf32>
    %659 = vector.shape_cast %656 : vector<8x256xf32> to vector<1x1x8x256xf32>
    tpu.vector_store %arg8[%c0_378, %c7_379, %c0_380, %c0_381], %659 {strides = array<i32>} : memref<1x16x8x256xf32, #tpu.memory_space<vmem>>, vector<1x1x8x256xf32>,
    %c0_382 = arith.constant 0 : index
    %c8_383 = arith.constant 8 : index
    %c0_384 = arith.constant 0 : index
    %c0_385 = arith.constant 0 : index
    %660 = vector.load %arg2[%c0_382, %c8_383, %c0_384, %c0_385] : memref<1x16x8x256xf32, #tpu.memory_space<vmem>>, vector<1x1x8x256xf32>
    %661 = vector.shape_cast %660 : vector<1x1x8x256xf32> to vector<8x256xf32>
    %662 = arith.mulf %661, %611 : vector<8x256xf32>
    %c0_386 = arith.constant 0 : index
    %c8_387 = arith.constant 8 : index
    %c0_388 = arith.constant 0 : index
    %c0_389 = arith.constant 0 : index
    %663 = vector.load %arg8[%c0_386, %c8_387, %c0_388, %c0_389] : memref<1x16x8x256xf32, #tpu.memory_space<vmem>>, vector<1x1x8x256xf32>
    %664 = vector.shape_cast %663 : vector<1x1x8x256xf32> to vector<8x256xf32>
    %665 = vector.shape_cast %662 : vector<8x256xf32> to vector<1x1x8x256xf32>
    tpu.vector_store %arg8[%c0_386, %c8_387, %c0_388, %c0_389], %665 {strides = array<i32>} : memref<1x16x8x256xf32, #tpu.memory_space<vmem>>, vector<1x1x8x256xf32>,
    %c0_390 = arith.constant 0 : index
    %c9_391 = arith.constant 9 : index
    %c0_392 = arith.constant 0 : index
    %c0_393 = arith.constant 0 : index
    %666 = vector.load %arg2[%c0_390, %c9_391, %c0_392, %c0_393] : memref<1x16x8x256xf32, #tpu.memory_space<vmem>>, vector<1x1x8x256xf32>
    %667 = vector.shape_cast %666 : vector<1x1x8x256xf32> to vector<8x256xf32>
    %668 = arith.mulf %667, %611 : vector<8x256xf32>
    %c0_394 = arith.constant 0 : index
    %c9_395 = arith.constant 9 : index
    %c0_396 = arith.constant 0 : index
    %c0_397 = arith.constant 0 : index
    %669 = vector.load %arg8[%c0_394, %c9_395, %c0_396, %c0_397] : memref<1x16x8x256xf32, #tpu.memory_space<vmem>>, vector<1x1x8x256xf32>
    %670 = vector.shape_cast %669 : vector<1x1x8x256xf32> to vector<8x256xf32>
    %671 = vector.shape_cast %668 : vector<8x256xf32> to vector<1x1x8x256xf32>
    tpu.vector_store %arg8[%c0_394, %c9_395, %c0_396, %c0_397], %671 {strides = array<i32>} : memref<1x16x8x256xf32, #tpu.memory_space<vmem>>, vector<1x1x8x256xf32>,
    %c0_398 = arith.constant 0 : index
    %c10_399 = arith.constant 10 : index
    %c0_400 = arith.constant 0 : index
    %c0_401 = arith.constant 0 : index
    %672 = vector.load %arg2[%c0_398, %c10_399, %c0_400, %c0_401] : memref<1x16x8x256xf32, #tpu.memory_space<vmem>>, vector<1x1x8x256xf32>
    %673 = vector.shape_cast %672 : vector<1x1x8x256xf32> to vector<8x256xf32>
    %674 = arith.mulf %673, %611 : vector<8x256xf32>
    %c0_402 = arith.constant 0 : index
    %c10_403 = arith.constant 10 : index
    %c0_404 = arith.constant 0 : index
    %c0_405 = arith.constant 0 : index
    %675 = vector.load %arg8[%c0_402, %c10_403, %c0_404, %c0_405] : memref<1x16x8x256xf32, #tpu.memory_space<vmem>>, vector<1x1x8x256xf32>
    %676 = vector.shape_cast %675 : vector<1x1x8x256xf32> to vector<8x256xf32>
    %677 = vector.shape_cast %674 : vector<8x256xf32> to vector<1x1x8x256xf32>
    tpu.vector_store %arg8[%c0_402, %c10_403, %c0_404, %c0_405], %677 {strides = array<i32>} : memref<1x16x8x256xf32, #tpu.memory_space<vmem>>, vector<1x1x8x256xf32>,
    %c0_406 = arith.constant 0 : index
    %c11_407 = arith.constant 11 : index
    %c0_408 = arith.constant 0 : index
    %c0_409 = arith.constant 0 : index
    %678 = vector.load %arg2[%c0_406, %c11_407, %c0_408, %c0_409] : memref<1x16x8x256xf32, #tpu.memory_space<vmem>>, vector<1x1x8x256xf32>
    %679 = vector.shape_cast %678 : vector<1x1x8x256xf32> to vector<8x256xf32>
    %680 = arith.mulf %679, %611 : vector<8x256xf32>
    %c0_410 = arith.constant 0 : index
    %c11_411 = arith.constant 11 : index
    %c0_412 = arith.constant 0 : index
    %c0_413 = arith.constant 0 : index
    %681 = vector.load %arg8[%c0_410, %c11_411, %c0_412, %c0_413] : memref<1x16x8x256xf32, #tpu.memory_space<vmem>>, vector<1x1x8x256xf32>
    %682 = vector.shape_cast %681 : vector<1x1x8x256xf32> to vector<8x256xf32>
    %683 = vector.shape_cast %680 : vector<8x256xf32> to vector<1x1x8x256xf32>
    tpu.vector_store %arg8[%c0_410, %c11_411, %c0_412, %c0_413], %683 {strides = array<i32>} : memref<1x16x8x256xf32, #tpu.memory_space<vmem>>, vector<1x1x8x256xf32>,
    %c0_414 = arith.constant 0 : index
    %c12_415 = arith.constant 12 : index
    %c0_416 = arith.constant 0 : index
    %c0_417 = arith.constant 0 : index
    %684 = vector.load %arg2[%c0_414, %c12_415, %c0_416, %c0_417] : memref<1x16x8x256xf32, #tpu.memory_space<vmem>>, vector<1x1x8x256xf32>
    %685 = vector.shape_cast %684 : vector<1x1x8x256xf32> to vector<8x256xf32>
    %686 = arith.mulf %685, %611 : vector<8x256xf32>
    %c0_418 = arith.constant 0 : index
    %c12_419 = arith.constant 12 : index
    %c0_420 = arith.constant 0 : index
    %c0_421 = arith.constant 0 : index
    %687 = vector.load %arg8[%c0_418, %c12_419, %c0_420, %c0_421] : memref<1x16x8x256xf32, #tpu.memory_space<vmem>>, vector<1x1x8x256xf32>
    %688 = vector.shape_cast %687 : vector<1x1x8x256xf32> to vector<8x256xf32>
    %689 = vector.shape_cast %686 : vector<8x256xf32> to vector<1x1x8x256xf32>
    tpu.vector_store %arg8[%c0_418, %c12_419, %c0_420, %c0_421], %689 {strides = array<i32>} : memref<1x16x8x256xf32, #tpu.memory_space<vmem>>, vector<1x1x8x256xf32>,
    %c0_422 = arith.constant 0 : index
    %c13_423 = arith.constant 13 : index
    %c0_424 = arith.constant 0 : index
    %c0_425 = arith.constant 0 : index
    %690 = vector.load %arg2[%c0_422, %c13_423, %c0_424, %c0_425] : memref<1x16x8x256xf32, #tpu.memory_space<vmem>>, vector<1x1x8x256xf32>
    %691 = vector.shape_cast %690 : vector<1x1x8x256xf32> to vector<8x256xf32>
    %692 = arith.mulf %691, %611 : vector<8x256xf32>
    %c0_426 = arith.constant 0 : index
    %c13_427 = arith.constant 13 : index
    %c0_428 = arith.constant 0 : index
    %c0_429 = arith.constant 0 : index
    %693 = vector.load %arg8[%c0_426, %c13_427, %c0_428, %c0_429] : memref<1x16x8x256xf32, #tpu.memory_space<vmem>>, vector<1x1x8x256xf32>
    %694 = vector.shape_cast %693 : vector<1x1x8x256xf32> to vector<8x256xf32>
    %695 = vector.shape_cast %692 : vector<8x256xf32> to vector<1x1x8x256xf32>
    tpu.vector_store %arg8[%c0_426, %c13_427, %c0_428, %c0_429], %695 {strides = array<i32>} : memref<1x16x8x256xf32, #tpu.memory_space<vmem>>, vector<1x1x8x256xf32>,
    %c0_430 = arith.constant 0 : index
    %c14_431 = arith.constant 14 : index
    %c0_432 = arith.constant 0 : index
    %c0_433 = arith.constant 0 : index
    %696 = vector.load %arg2[%c0_430, %c14_431, %c0_432, %c0_433] : memref<1x16x8x256xf32, #tpu.memory_space<vmem>>, vector<1x1x8x256xf32>
    %697 = vector.shape_cast %696 : vector<1x1x8x256xf32> to vector<8x256xf32>
    %698 = arith.mulf %697, %611 : vector<8x256xf32>
    %c0_434 = arith.constant 0 : index
    %c14_435 = arith.constant 14 : index
    %c0_436 = arith.constant 0 : index
    %c0_437 = arith.constant 0 : index
    %699 = vector.load %arg8[%c0_434, %c14_435, %c0_436, %c0_437] : memref<1x16x8x256xf32, #tpu.memory_space<vmem>>, vector<1x1x8x256xf32>
    %700 = vector.shape_cast %699 : vector<1x1x8x256xf32> to vector<8x256xf32>
    %701 = vector.shape_cast %698 : vector<8x256xf32> to vector<1x1x8x256xf32>
    tpu.vector_store %arg8[%c0_434, %c14_435, %c0_436, %c0_437], %701 {strides = array<i32>} : memref<1x16x8x256xf32, #tpu.memory_space<vmem>>, vector<1x1x8x256xf32>,
    %c0_438 = arith.constant 0 : index
    %c15_439 = arith.constant 15 : index
    %c0_440 = arith.constant 0 : index
    %c0_441 = arith.constant 0 : index
    %702 = vector.load %arg2[%c0_438, %c15_439, %c0_440, %c0_441] : memref<1x16x8x256xf32, #tpu.memory_space<vmem>>, vector<1x1x8x256xf32>
    %703 = vector.shape_cast %702 : vector<1x1x8x256xf32> to vector<8x256xf32>
    %704 = arith.mulf %703, %611 : vector<8x256xf32>
    %c0_442 = arith.constant 0 : index
    %c15_443 = arith.constant 15 : index
    %c0_444 = arith.constant 0 : index
    %c0_445 = arith.constant 0 : index
    %705 = vector.load %arg8[%c0_442, %c15_443, %c0_444, %c0_445] : memref<1x16x8x256xf32, #tpu.memory_space<vmem>>, vector<1x1x8x256xf32>
    %706 = vector.shape_cast %705 : vector<1x1x8x256xf32> to vector<8x256xf32>
    %707 = vector.shape_cast %704 : vector<8x256xf32> to vector<1x1x8x256xf32>
    tpu.vector_store %arg8[%c0_442, %c15_443, %c0_444, %c0_445], %707 {strides = array<i32>} : memref<1x16x8x256xf32, #tpu.memory_space<vmem>>, vector<1x1x8x256xf32>,
    return
  }
  func.func @transform_0(%arg0: i32, %arg1: i32) -> (i32, i32, i32, i32) {
    %c0_i32 = arith.constant 0 : i32
    %c0_i32_0 = arith.constant 0 : i32
    %c0_i32_1 = arith.constant 0 : i32
    return %arg0, %c0_i32, %c0_i32_0, %arg1 : i32, i32, i32, i32
  }
  func.func @transform_1(%arg0: i32, %arg1: i32) -> (i32, i32) {
    %c0_i32 = arith.constant 0 : i32
    %c0_i32_0 = arith.constant 0 : i32
    %c0_i32_1 = arith.constant 0 : i32
    return %c0_i32, %c0_i32_0 : i32, i32
  }
  func.func @transform_2(%arg0: i32, %arg1: i32) -> i32 {
    %c0_i32 = arith.constant 0 : i32
    %c0_i32_0 = arith.constant 0 : i32
    return %c0_i32 : i32
  }
  func.func @transform_3(%arg0: i32, %arg1: i32) -> i32 {
    %c0_i32 = arith.constant 0 : i32
    %c0_i32_0 = arith.constant 0 : i32
    return %c0_i32 : i32
  }
  func.func @transform_4(%arg0: i32, %arg1: i32) -> i32 {
    %c0_i32 = arith.constant 0 : i32
    %c0_i32_0 = arith.constant 0 : i32
    return %c0_i32 : i32
  }
  func.func @transform_5(%arg0: i32, %arg1: i32) -> i32 {
    %c0_i32 = arith.constant 0 : i32
    %c0_i32_0 = arith.constant 0 : i32
    return %c0_i32 : i32
  }
  func.func @transform_6(%arg0: i32, %arg1: i32) -> (i32, i32, i32, i32) {
    %c0_i32 = arith.constant 0 : i32
    %c0_i32_0 = arith.constant 0 : i32
    %c0_i32_1 = arith.constant 0 : i32
    return %arg0, %c0_i32, %c0_i32_0, %arg1 : i32, i32, i32, i32
  }
}

</mosaic_0001>

<llo_original>
// kernel: spatio_temporal_attention_3d.1
$region0: #{spatio_temporal_attention_3d.1}
  #allocation0 [shape = 'u32[]', space=smem, size = 0x4, offset = 0x4, fixed_abs, tag = 'smem constant byte address 0x4 - core index']
  #allocation1 [shape = 'u32[144,128]{1,0:T(1,128)}', space=vmem, size = 0x12000, scoped, tag = 'internal scratch']
  #allocation2 [shape = 'f32[1]{0:T(128)S(6)}', space=smem, size = 0x200, scoped, tag = 'scoped memory for spatio_temporal_attention_3d.1']
  #allocation3 [shape = 'f32[1]{0:T(128)S(6)}', space=smem, size = 0x200, scoped, tag = 'scoped memory for spatio_temporal_attention_3d.1']
  %s0 = inlined_call_operand.vmem [shape: f32[2,16,8,256], index: 0, kind: input, shape index: {}]
  %s1 = inlined_call_operand.vmem [shape: f32[7,16], index: 1, kind: input, shape index: {}]
  %s2 = inlined_call_operand.<no memory space> [shape: f32[1], index: 2, kind: input, shape index: {}]
  %s3 = inlined_call_operand.vmem [shape: f32[2], index: 3, kind: input, shape index: {}]
  %s4 = inlined_call_operand.vmem [shape: f32[2], index: 4, kind: input, shape index: {}]
  %s5 = inlined_call_operand.<no memory space> [shape: f32[1], index: 5, kind: input, shape index: {}]
  %s6 = inlined_call_operand.vmem [shape: f32[2,16,8,256], index: 6, kind: output, shape index: {}]
  %s7 = sld [smem:[#allocation0]]
  $region69: #{spatio_temporal_attention_3d.1} parent=0
    _
  %s9 = ssub.s32 1, %s7
  %s10 = scalar_select 0, %s9, %s7
  %11 = sst [smem:[#allocation2]] %s2
  %12 = sst [smem:[#allocation3]] %s5
  $region1: #{spatio_temporal_attention_3d.1} parent=0
    #allocation4 [shape = 'u8[4096]{0}', space=smem, size = 0x1000, scoped, tag = 'input window, operand 1, single buffered']
    #allocation5 [shape = 's32[2]{0}', space=sflag, size = 0x8, scoped, tag = 'scoped memory for spatio_temporal_attention_3d.1']
    #allocation6 [shape = 'u8[512]{0}', space=smem, size = 0x200, scoped, tag = 'input window, operand 3, single buffered']
    #allocation7 [shape = 's32[1]{0}', space=sflag, size = 0x4, scoped, tag = 'scoped memory for spatio_temporal_attention_3d.1']
    #allocation8 [shape = 'u8[512]{0}', space=smem, size = 0x200, scoped, tag = 'input window, operand 4, single buffered']
    %13 = vsyncpa [#allocation5], 0
    %14 = vsyncpa [#allocation7], 0
    loop: start=0, step=1, limit=4
    $region2: #{spatio_temporal_attention_3d.1} parent=1 // loop_pre_header
      _
    $region3: #{spatio_temporal_attention_3d.1} parent=1 // loop_header
      %s16 = sphi 0, %s20
      %p17 = scmp.ge.s32.totalorder %s16, 4
      %s23 = sphi 0, %s35
      %s24 = sphi 0, %s31
      %s25 = sphi 0, %s23
      %s26 = sphi 0, %s24
      %s27 = sphi 0, %s25
      %s28 = sphi 0, %s26
      %s40 = sphi 0, %s42
      %s43 = sphi 0, %s40
      %s44 = sphi 0, %s43
      %s60 = sphi 0, %s44
      %s64 = sphi 0, %s64
      %s66 = sphi 0, %s64
      %s67 = sphi 0, %s66
      %s81 = sphi 0, %s67
      %s85 = sphi 0, %s85
      %s87 = sphi 0, %s85
      %s88 = sphi 0, %s87
      %s102 = sphi 0, %s88
      %s106 = sphi 0, %s106
      %s108 = sphi 0, %s106
      %s109 = sphi 0, %s108
      %s123 = sphi 0, %s109
      %s127 = sphi 0, %s127
      %s129 = sphi 0, %s127
      %s130 = sphi 0, %s129
      %s144 = sphi 0, %s130
      %s148 = sphi 0, %s148
      %s150 = sphi 0, %s148
      %s151 = sphi 0, %s150
      %s165 = sphi 0, %s151
      %s173 = sphi 0, %s175
      %s176 = sphi 0, %s173
      %s177 = sphi 0, %s176
      %s193 = sphi 0, %s177
    $region4: #{spatio_temporal_attention_3d.1} parent=1 // loop_header_branch
      %19 = sbr.rel (%p17) target = $region8
    $region5: #{spatio_temporal_attention_3d.1} parent=1 // loop_body
      %s21 = ssub.s32 %s16, 1
      %s22 = ssub.s32 %s16, 2
      %s29 = sadd.s32 1, %s24
      %p30 = scmp.ge.s32.totalorder %s29, 1
      %s31 = scalar_select %p30, 0, %s29
      %s32 = sadd.s32 1, %s23
      %s33 = scalar_select %p30, %s32, %s23
      %p34 = scmp.ge.s32.totalorder %s33, 2
      %s35 = scalar_select %p34, 0, %s33
      %s36 = ssub.s32 %s23, %s35
      %s37 = ssub.s32 %s24, %s31
      %s38 = sor.u32 %s36, %s37
      %p39 = scmp.eq.s32.totalorder %s38, 0
      %s41 = sadd.s32 %s40, 1
      %s42 = scalar_select %p39, %s40, %s41
      %p45 = pneg %p39
      %p46 = scmp.eq.s32.totalorder %s16, 1
      %p47 = por %p45, %p46
      %p48 = scmp.ne.s32.totalorder %s40, %s43
      %p49 = scmp.eq.s32.totalorder %s16, 0
      %p50 = por %p48, %p49
      %p51 = scmp.ne.s32.totalorder %s40, %s43
      %p52 = scmp.eq.s32.totalorder %s21, 1
      %p53 = por %p51, %p52
      %p54 = scmp.ne.s32.totalorder %s43, %s44
      %p55 = scmp.eq.s32.totalorder %s21, 0
      %p56 = por %p54, %p55
      %p57 = scmp.ne.s32.totalorder %s43, %s44
      %p58 = scmp.eq.s32.totalorder %s22, 1
      %p59 = por %p57, %p58
      %p61 = scmp.ne.s32.totalorder %s44, %s60
      %p62 = scmp.eq.s32.totalorder %s22, 0
      %p63 = por %p61, %p62
      %s65 = sadd.s32 %s64, 1
      %p68 = scmp.eq.s32.totalorder %s16, 1
      %p69 = scmp.ne.s32.totalorder %s64, %s66
      %p70 = scmp.eq.s32.totalorder %s16, 0
      %p71 = por %p69, %p70
      %p72 = scmp.ne.s32.totalorder %s64, %s66
      %p73 = scmp.eq.s32.totalorder %s21, 1
      %p74 = por %p72, %p73
      %p75 = scmp.ne.s32.totalorder %s66, %s67
      %p76 = scmp.eq.s32.totalorder %s21, 0
      %p77 = por %p75, %p76
      %p78 = scmp.ne.s32.totalorder %s66, %s67
      %p79 = scmp.eq.s32.totalorder %s22, 1
      %p80 = por %p78, %p79
      %p82 = scmp.ne.s32.totalorder %s67, %s81
      %p83 = scmp.eq.s32.totalorder %s22, 0
      %p84 = por %p82, %p83
      %s86 = sadd.s32 %s85, 1
      %p89 = scmp.eq.s32.totalorder %s16, 1
      %p90 = scmp.ne.s32.totalorder %s85, %s87
      %p91 = scmp.eq.s32.totalorder %s16, 0
      %p92 = por %p90, %p91
      %p93 = scmp.ne.s32.totalorder %s85, %s87
      %p94 = scmp.eq.s32.totalorder %s21, 1
      %p95 = por %p93, %p94
      %p96 = scmp.ne.s32.totalorder %s87, %s88
      %p97 = scmp.eq.s32.totalorder %s21, 0
      %p98 = por %p96, %p97
      %p99 = scmp.ne.s32.totalorder %s87, %s88
      %p100 = scmp.eq.s32.totalorder %s22, 1
      %p101 = por %p99, %p100
      %p103 = scmp.ne.s32.totalorder %s88, %s102
      %p104 = scmp.eq.s32.totalorder %s22, 0
      %p105 = por %p103, %p104
      %s107 = sadd.s32 %s106, 1
      %p110 = scmp.eq.s32.totalorder %s16, 1
      %p111 = scmp.ne.s32.totalorder %s106, %s108
      %p112 = scmp.eq.s32.totalorder %s16, 0
      %p113 = por %p111, %p112
      %p114 = scmp.ne.s32.totalorder %s106, %s108
      %p115 = scmp.eq.s32.totalorder %s21, 1
      %p116 = por %p114, %p115
      %p117 = scmp.ne.s32.totalorder %s108, %s109
      %p118 = scmp.eq.s32.totalorder %s21, 0
      %p119 = por %p117, %p118
      %p120 = scmp.ne.s32.totalorder %s108, %s109
      %p121 = scmp.eq.s32.totalorder %s22, 1
      %p122 = por %p120, %p121
      %p124 = scmp.ne.s32.totalorder %s109, %s123
      %p125 = scmp.eq.s32.totalorder %s22, 0
      %p126 = por %p124, %p125
      %s128 = sadd.s32 %s127, 1
      %p131 = scmp.eq.s32.totalorder %s16, 1
      %p132 = scmp.ne.s32.totalorder %s127, %s129
      %p133 = scmp.eq.s32.totalorder %s16, 0
      %p134 = por %p132, %p133
      %p135 = scmp.ne.s32.totalorder %s127, %s129
      %p136 = scmp.eq.s32.totalorder %s21, 1
      %p137 = por %p135, %p136
      %p138 = scmp.ne.s32.totalorder %s129, %s130
      %p139 = scmp.eq.s32.totalorder %s21, 0
      %p140 = por %p138, %p139
      %p141 = scmp.ne.s32.totalorder %s129, %s130
      %p142 = scmp.eq.s32.totalorder %s22, 1
      %p143 = por %p141, %p142
      %p145 = scmp.ne.s32.totalorder %s130, %s144
      %p146 = scmp.eq.s32.totalorder %s22, 0
      %p147 = por %p145, %p146
      %s149 = sadd.s32 %s148, 1
      %p152 = scmp.eq.s32.totalorder %s16, 1
      %p153 = scmp.ne.s32.totalorder %s148, %s150
      %p154 = scmp.eq.s32.totalorder %s16, 0
      %p155 = por %p153, %p154
      %p156 = scmp.ne.s32.totalorder %s148, %s150
      %p157 = scmp.eq.s32.totalorder %s21, 1
      %p158 = por %p156, %p157
      %p159 = scmp.ne.s32.totalorder %s150, %s151
      %p160 = scmp.eq.s32.totalorder %s21, 0
      %p161 = por %p159, %p160
      %p162 = scmp.ne.s32.totalorder %s150, %s151
      %p163 = scmp.eq.s32.totalorder %s22, 1
      %p164 = por %p162, %p163
      %p166 = scmp.ne.s32.totalorder %s151, %s165
      %p167 = scmp.eq.s32.totalorder %s22, 0
      %p168 = por %p166, %p167
      %s169 = ssub.s32 %s23, %s35
      %s170 = ssub.s32 %s24, %s31
      %s171 = sor.u32 %s169, %s170
      %p172 = scmp.eq.s32.totalorder %s171, 0
      %s174 = sadd.s32 %s173, 1
      %s175 = scalar_select %p172, %s173, %s174
      %p178 = pneg %p172
      %p179 = scmp.eq.s32.totalorder %s16, 1
      %p180 = por %p178, %p179
      %p181 = scmp.ne.s32.totalorder %s173, %s176
      %p182 = scmp.eq.s32.totalorder %s16, 0
      %p183 = por %p181, %p182
      %p184 = scmp.ne.s32.totalorder %s173, %s176
      %p185 = scmp.eq.s32.totalorder %s21, 1
      %p186 = por %p184, %p185
      %p187 = scmp.ne.s32.totalorder %s176, %s177
      %p188 = scmp.eq.s32.totalorder %s21, 0
      %p189 = por %p187, %p188
      %p190 = scmp.ne.s32.totalorder %s176, %s177
      %p191 = scmp.eq.s32.totalorder %s22, 1
      %p192 = por %p190, %p191
      %p194 = scmp.ne.s32.totalorder %s177, %s193
      %p195 = scmp.eq.s32.totalorder %s22, 0
      %p196 = por %p194, %p195
      %p197 = scmp.le.s32.totalorder 1, %s16
      %p198 = scmp.lt.s32.totalorder %s16, 3
      %p199 = pnand %p197, %p198
      %p200 = pneg %p199
      // Predicated region
      $region9: #{spatio_temporal_attention_3d.1} parent=5 // pred_check
        _
      $region10: #{spatio_temporal_attention_3d.1} parent=5 // pred_check_branch
        %202 = sbr.rel (%p199) target = $region12
      $region11: #{spatio_temporal_attention_3d.1} parent=5 // pred_region
        %s203 = ssub.s32 %s16, 1
        // Predicated region
        $region13: #{spatio_temporal_attention_3d.1} parent=11 // pred_check
          %p204 = pneg %p77
        $region14: #{spatio_temporal_attention_3d.1} parent=11 // pred_check_branch
          %206 = sbr.rel (%p204) target = $region16
        $region15: #{spatio_temporal_attention_3d.1} parent=11 // pred_region
          %s208 = ssub.s32 128, 128
          %209 = vsyncadd [#allocation5], %s208
          %s211 = sshll.u32 %s1, 4
          %s212 = int_to_ptr.vmem [resolvable:$true] %s211
          %214 = dma.vmem_to_smem %s212, 128, [#allocation4], [#allocation5]
        $region16: #{spatio_temporal_attention_3d.1} parent=11 // pred_fallthru
          _
        // Predicated region
        $region17: #{spatio_temporal_attention_3d.1} parent=11 // pred_check
          %p215 = pneg %p98
        $region18: #{spatio_temporal_attention_3d.1} parent=11 // pred_check_branch
          %217 = sbr.rel (%p215) target = $region20
        $region19: #{spatio_temporal_attention_3d.1} parent=11 // pred_region
          _
        $region20: #{spatio_temporal_attention_3d.1} parent=11 // pred_fallthru
          _
        // Predicated region
        $region21: #{spatio_temporal_attention_3d.1} parent=11 // pred_check
          %p218 = pneg %p119
        $region22: #{spatio_temporal_attention_3d.1} parent=11 // pred_check_branch
          %220 = sbr.rel (%p218) target = $region24
        $region23: #{spatio_temporal_attention_3d.1} parent=11 // pred_region
          %s222 = ssub.s32 16, 16
          %223 = vsyncadd [#allocation7], %s222
          %s225 = sshll.u32 %s3, 4
          %s226 = int_to_ptr.vmem [resolvable:$true] %s225
          %228 = dma.vmem_to_smem %s226, 16, [#allocation6], [#allocation7]
        $region24: #{spatio_temporal_attention_3d.1} parent=11 // pred_fallthru
          _
        // Predicated region
        $region25: #{spatio_temporal_attention_3d.1} parent=11 // pred_check
          %p229 = pneg %p140
        $region26: #{spatio_temporal_attention_3d.1} parent=11 // pred_check_branch
          %231 = sbr.rel (%p229) target = $region28
        $region27: #{spatio_temporal_attention_3d.1} parent=11 // pred_region
          %s233 = ssub.s32 16, 16
          %234 = vsyncadd [#allocation7], %s233
          %s236 = sshll.u32 %s4, 4
          %s237 = int_to_ptr.vmem [resolvable:$true] %s236
          %239 = dma.vmem_to_smem %s237, 16, [#allocation8], [#allocation7]
        $region28: #{spatio_temporal_attention_3d.1} parent=11 // pred_fallthru
          _
        // Predicated region
        $region29: #{spatio_temporal_attention_3d.1} parent=11 // pred_check
          %p240 = pneg %p161
        $region30: #{spatio_temporal_attention_3d.1} parent=11 // pred_check_branch
          %242 = sbr.rel (%p240) target = $region32
        $region31: #{spatio_temporal_attention_3d.1} parent=11 // pred_region
          _
        $region32: #{spatio_temporal_attention_3d.1} parent=11 // pred_fallthru
          _
      $region12: #{spatio_temporal_attention_3d.1} parent=5 // pred_fallthru
        _
      %p243 = scmp.lt.s32.totalorder %s16, 2
      // Predicated region
      $region33: #{spatio_temporal_attention_3d.1} parent=5 // pred_check
        %p244 = pneg %p243
      $region34: #{spatio_temporal_attention_3d.1} parent=5 // pred_check_branch
        %246 = sbr.rel (%p244) target = $region36
      $region35: #{spatio_temporal_attention_3d.1} parent=5 // pred_region
        // Predicated region
        $region37: #{spatio_temporal_attention_3d.1} parent=35 // pred_check
          %p247 = pneg %p50
        $region38: #{spatio_temporal_attention_3d.1} parent=35 // pred_check_branch
          %249 = sbr.rel (%p247) target = $region40
        $region39: #{spatio_temporal_attention_3d.1} parent=35 // pred_region
          %s250 = smul.u32 2, %s24
          %p251 = scmp.lt.s32.totalorder %s23, 1
          %s252 = scalar_select %p251, %s23, 1
          %p253 = scmp.lt.s32.totalorder %s250, 1
          %s254 = scalar_select %p253, %s250, 1
          %s255 = smul.addr %s252, 32
          %s256 = sadd.s32 %s254, %s255
          %s257 = smul.addr %s256, 8
          %s258 = scalar_lea.vmem %s0, %s257
          %s259 = smul.u32 2, %s24
        $region40: #{spatio_temporal_attention_3d.1} parent=35 // pred_fallthru
          _
      $region36: #{spatio_temporal_attention_3d.1} parent=5 // pred_fallthru
        _
      %p260 = scmp.le.s32.totalorder 1, %s16
      %p261 = scmp.lt.s32.totalorder %s16, 3
      %p262 = pnand %p260, %p261
      %p263 = pneg %p262
      // Predicated region
      $region41: #{spatio_temporal_attention_3d.1} parent=5 // pred_check
        _
      $region42: #{spatio_temporal_attention_3d.1} parent=5 // pred_check_branch
        %265 = sbr.rel (%p262) target = $region44
      $region43: #{spatio_temporal_attention_3d.1} parent=5 // pred_region
        %s266 = ssub.s32 %s16, 1
        // Predicated region
        $region45: #{spatio_temporal_attention_3d.1} parent=43 // pred_check
          %p267 = pneg %p77
        $region46: #{spatio_temporal_attention_3d.1} parent=43 // pred_check_branch
          %269 = sbr.rel (%p267) target = $region48
        $region47: #{spatio_temporal_attention_3d.1} parent=43 // pred_region
          %270 = dma.done [#allocation5], 128
        $region48: #{spatio_temporal_attention_3d.1} parent=43 // pred_fallthru
          _
        // Predicated region
        $region49: #{spatio_temporal_attention_3d.1} parent=43 // pred_check
          %p271 = pneg %p119
        $region50: #{spatio_temporal_attention_3d.1} parent=43 // pred_check_branch
          %273 = sbr.rel (%p271) target = $region52
        $region51: #{spatio_temporal_attention_3d.1} parent=43 // pred_region
          %274 = dma.done [#allocation7], 16
        $region52: #{spatio_temporal_attention_3d.1} parent=43 // pred_fallthru
          _
        // Predicated region
        $region53: #{spatio_temporal_attention_3d.1} parent=43 // pred_check
          %p275 = pneg %p140
        $region54: #{spatio_temporal_attention_3d.1} parent=43 // pred_check_branch
          %277 = sbr.rel (%p275) target = $region56
        $region55: #{spatio_temporal_attention_3d.1} parent=43 // pred_region
          %278 = dma.done [#allocation7], 16
        $region56: #{spatio_temporal_attention_3d.1} parent=43 // pred_fallthru
          _
        %279 = sfence
        %s280 = smul.u32 2, %s26
        %p281 = scmp.lt.s32.totalorder %s25, 1
        %s282 = scalar_select %p281, %s25, 1
        %p283 = scmp.lt.s32.totalorder %s280, 1
        %s284 = scalar_select %p283, %s280, 1
        %s285 = smul.addr %s282, 32
        %s286 = sadd.s32 %s284, %s285
        %s287 = smul.addr %s286, 8
        %s288 = scalar_lea.vmem %s0, %s287
        %p289 = pneg %p56
        %p290 = pneg %p53
        %p291 = pneg %p77
        %p292 = pneg %p74
        %p293 = pneg %p98
        %p294 = pneg %p95
        %p295 = pneg %p119
        %p296 = pneg %p116
        %p297 = pneg %p140
        %p298 = pneg %p137
        %p299 = pneg %p161
        %p300 = pneg %p158
        %p301 = pneg %p189
        %p302 = pneg %p186
        %s303 = smul.u32 2, %s26
        %p304 = scmp.lt.s32.totalorder %s25, 1
        %s305 = scalar_select %p304, %s25, 1
        %p306 = scmp.lt.s32.totalorder %s303, 1
        %s307 = scalar_select %p306, %s303, 1
        %s308 = smul.addr %s305, 32
        %s309 = sadd.s32 %s307, %s308
        %s310 = smul.addr %s309, 8
        %s311 = scalar_lea.vmem %s6, %s310
        %s312 = smul.u32 2, %s26
        %p313 = scmp.lt.s32.totalorder %s25, 1
        %s314 = scalar_select %p313, %s25, 1
        %p315 = scmp.lt.s32.totalorder %s312, 1
        %s316 = scalar_select %p315, %s312, 1
        %s317 = smul.addr %s314, 32
        %s318 = sadd.s32 %s316, %s317
        %s319 = smul.addr %s318, 8
        %s320 = scalar_lea.vmem %s0, %s319
        %s321 = smul.u32 2, %s26
        %s322 = smul.u32 2, %s26
        %p323 = scmp.lt.s32.totalorder %s25, 1
        %s324 = scalar_select %p323, %s25, 1
        %p325 = scmp.lt.s32.totalorder %s322, 1
        %s326 = scalar_select %p325, %s322, 1
        %s327 = smul.addr %s324, 32
        %s328 = sadd.s32 %s326, %s327
        %s329 = smul.addr %s328, 8
        %s330 = scalar_lea.vmem %s6, %s329
        %s331 = smul.u32 2, %s26
        %v332 = vld [vmem:[%s320] sm:$0xff]
        %v333 = vld [vmem:[%s320 + $0x8] sm:$0xff]
        %s334 = sld [smem:[#allocation4]]
        %v335 = vstv %s334
        %v336 = vmul.f32 %v332, %v335
        %v337 = vmul.f32 %v333, %v335
        %v338 = vadd.f32 %v336, 0.0
        %v339 = vadd.f32 %v337, 0.0
        %s340 = sld [smem:[#allocation4 + $0x80]]
        %v341 = vstv %s340
        %v342 = vmul.f32 %v332, %v341
        %v343 = vmul.f32 %v333, %v341
        %v344 = vadd.f32 %v342, 0.0
        %v345 = vadd.f32 %v343, 0.0
        %s346 = sld [smem:[#allocation4 + $0x100]]
        %v347 = vstv %s346
        %v348 = vmul.f32 %v332, %v347
        %v349 = vmul.f32 %v333, %v347
        %v350 = vadd.f32 %v348, 0.0
        %v351 = vadd.f32 %v349, 0.0
        %s352 = sld [smem:[#allocation4 + $0x180]]
        %v353 = vstv %s352
        %v354 = vmul.f32 %v332, %v353
        %v355 = vmul.f32 %v333, %v353
        %v356 = vadd.f32 %v354, 0.0
        %v357 = vadd.f32 %v355, 0.0
        %s358 = sld [smem:[#allocation4 + $0x200]]
        %v359 = vstv %s358
        %v360 = vmul.f32 %v332, %v359
        %v361 = vmul.f32 %v333, %v359
        %v362 = vadd.f32 %v360, 0.0
        %v363 = vadd.f32 %v361, 0.0
        %s364 = sld [smem:[#allocation4 + $0x280]]
        %v365 = vstv %s364
        %v366 = vmul.f32 %v332, %v365
        %v367 = vmul.f32 %v333, %v365
        %v368 = vadd.f32 %v366, 0.0
        %v369 = vadd.f32 %v367, 0.0
        %s370 = sld [smem:[#allocation4 + $0x300]]
        %v371 = vstv %s370
        %v372 = vmul.f32 %v332, %v371
        %v373 = vmul.f32 %v333, %v371
        %v374 = vadd.f32 %v372, 0.0
        %v375 = vadd.f32 %v373, 0.0
        %s376 = scalar_lea.vmem %s320, 16
        %v377 = vld [vmem:[%s376] sm:$0xff]
        %v378 = vld [vmem:[%s376 + $0x8] sm:$0xff]
        %s379 = sld [smem:[#allocation4 + $0x1]]
        %v380 = vstv %s379
        %v381 = vmul.f32 %v377, %v380
        %v382 = vmul.f32 %v378, %v380
        %v383 = vadd.f32 %v338, %v381
        %v384 = vadd.f32 %v339, %v382
        %s385 = sld [smem:[#allocation4 + $0x81]]
        %v386 = vstv %s385
        %v387 = vmul.f32 %v377, %v386
        %v388 = vmul.f32 %v378, %v386
        %v389 = vadd.f32 %v344, %v387
        %v390 = vadd.f32 %v345, %v388
        %s391 = sld [smem:[#allocation4 + $0x101]]
        %v392 = vstv %s391
        %v393 = vmul.f32 %v377, %v392
        %v394 = vmul.f32 %v378, %v392
        %v395 = vadd.f32 %v350, %v393
        %v396 = vadd.f32 %v351, %v394
        %s397 = sld [smem:[#allocation4 + $0x181]]
        %v398 = vstv %s397
        %v399 = vmul.f32 %v377, %v398
        %v400 = vmul.f32 %v378, %v398
        %v401 = vadd.f32 %v356, %v399
        %v402 = vadd.f32 %v357, %v400
        %s403 = sld [smem:[#allocation4 + $0x201]]
        %v404 = vstv %s403
        %v405 = vmul.f32 %v377, %v404
        %v406 = vmul.f32 %v378, %v404
        %v407 = vadd.f32 %v362, %v405
        %v408 = vadd.f32 %v363, %v406
        %s409 = sld [smem:[#allocation4 + $0x281]]
        %v410 = vstv %s409
        %v411 = vmul.f32 %v377, %v410
        %v412 = vmul.f32 %v378, %v410
        %v413 = vadd.f32 %v368, %v411
        %v414 = vadd.f32 %v369, %v412
        %s415 = sld [smem:[#allocation4 + $0x301]]
        %v416 = vstv %s415
        %v417 = vmul.f32 %v377, %v416
        %v418 = vmul.f32 %v378, %v416
        %v419 = vadd.f32 %v374, %v417
        %v420 = vadd.f32 %v375, %v418
        %s421 = scalar_lea.vmem %s320, 32
        %v422 = vld [vmem:[%s421] sm:$0xff]
        %v423 = vld [vmem:[%s421 + $0x8] sm:$0xff]
        %s424 = sld [smem:[#allocation4 + $0x2]]
        %v425 = vstv %s424
        %v426 = vmul.f32 %v422, %v425
        %v427 = vmul.f32 %v423, %v425
        %v428 = vadd.f32 %v383, %v426
        %v429 = vadd.f32 %v384, %v427
        %s430 = sld [smem:[#allocation4 + $0x82]]
        %v431 = vstv %s430
        %v432 = vmul.f32 %v422, %v431
        %v433 = vmul.f32 %v423, %v431
        %v434 = vadd.f32 %v389, %v432
        %v435 = vadd.f32 %v390, %v433
        %s436 = sld [smem:[#allocation4 + $0x102]]
        %v437 = vstv %s436
        %v438 = vmul.f32 %v422, %v437
        %v439 = vmul.f32 %v423, %v437
        %v440 = vadd.f32 %v395, %v438
        %v441 = vadd.f32 %v396, %v439
        %s442 = sld [smem:[#allocation4 + $0x182]]
        %v443 = vstv %s442
        %v444 = vmul.f32 %v422, %v443
        %v445 = vmul.f32 %v423, %v443
        %v446 = vadd.f32 %v401, %v444
        %v447 = vadd.f32 %v402, %v445
        %s448 = sld [smem:[#allocation4 + $0x202]]
        %v449 = vstv %s448
        %v450 = vmul.f32 %v422, %v449
        %v451 = vmul.f32 %v423, %v449
        %v452 = vadd.f32 %v407, %v450
        %v453 = vadd.f32 %v408, %v451
        %s454 = sld [smem:[#allocation4 + $0x282]]
        %v455 = vstv %s454
        %v456 = vmul.f32 %v422, %v455
        %v457 = vmul.f32 %v423, %v455
        %v458 = vadd.f32 %v413, %v456
        %v459 = vadd.f32 %v414, %v457
        %s460 = sld [smem:[#allocation4 + $0x302]]
        %v461 = vstv %s460
        %v462 = vmul.f32 %v422, %v461
        %v463 = vmul.f32 %v423, %v461
        %v464 = vadd.f32 %v419, %v462
        %v465 = vadd.f32 %v420, %v463
        %s466 = scalar_lea.vmem %s320, 48
        %v467 = vld [vmem:[%s466] sm:$0xff]
        %v468 = vld [vmem:[%s466 + $0x8] sm:$0xff]
        %s469 = sld [smem:[#allocation4 + $0x3]]
        %v470 = vstv %s469
        %v471 = vmul.f32 %v467, %v470
        %v472 = vmul.f32 %v468, %v470
        %v473 = vadd.f32 %v428, %v471
        %v474 = vadd.f32 %v429, %v472
        %s475 = sld [smem:[#allocation4 + $0x83]]
        %v476 = vstv %s475
        %v477 = vmul.f32 %v467, %v476
        %v478 = vmul.f32 %v468, %v476
        %v479 = vadd.f32 %v434, %v477
        %v480 = vadd.f32 %v435, %v478
        %s481 = sld [smem:[#allocation4 + $0x103]]
        %v482 = vstv %s481
        %v483 = vmul.f32 %v467, %v482
        %v484 = vmul.f32 %v468, %v482
        %v485 = vadd.f32 %v440, %v483
        %v486 = vadd.f32 %v441, %v484
        %s487 = sld [smem:[#allocation4 + $0x183]]
        %v488 = vstv %s487
        %v489 = vmul.f32 %v467, %v488
        %v490 = vmul.f32 %v468, %v488
        %v491 = vadd.f32 %v446, %v489
        %v492 = vadd.f32 %v447, %v490
        %s493 = sld [smem:[#allocation4 + $0x203]]
        %v494 = vstv %s493
        %v495 = vmul.f32 %v467, %v494
        %v496 = vmul.f32 %v468, %v494
        %v497 = vadd.f32 %v452, %v495
        %v498 = vadd.f32 %v453, %v496
        %s499 = sld [smem:[#allocation4 + $0x283]]
        %v500 = vstv %s499
        %v501 = vmul.f32 %v467, %v500
        %v502 = vmul.f32 %v468, %v500
        %v503 = vadd.f32 %v458, %v501
        %v504 = vadd.f32 %v459, %v502
        %s505 = sld [smem:[#allocation4 + $0x303]]
        %v506 = vstv %s505
        %v507 = vmul.f32 %v467, %v506
        %v508 = vmul.f32 %v468, %v506
        %v509 = vadd.f32 %v464, %v507
        %v510 = vadd.f32 %v465, %v508
        %s511 = scalar_lea.vmem %s320, 64
        %v512 = vld [vmem:[%s511] sm:$0xff]
        %v513 = vld [vmem:[%s511 + $0x8] sm:$0xff]
        %s514 = sld [smem:[#allocation4 + $0x4]]
        %v515 = vstv %s514
        %v516 = vmul.f32 %v512, %v515
        %v517 = vmul.f32 %v513, %v515
        %v518 = vadd.f32 %v473, %v516
        %v519 = vadd.f32 %v474, %v517
        %s520 = sld [smem:[#allocation4 + $0x84]]
        %v521 = vstv %s520
        %v522 = vmul.f32 %v512, %v521
        %v523 = vmul.f32 %v513, %v521
        %v524 = vadd.f32 %v479, %v522
        %v525 = vadd.f32 %v480, %v523
        %s526 = sld [smem:[#allocation4 + $0x104]]
        %v527 = vstv %s526
        %v528 = vmul.f32 %v512, %v527
        %v529 = vmul.f32 %v513, %v527
        %v530 = vadd.f32 %v485, %v528
        %v531 = vadd.f32 %v486, %v529
        %s532 = sld [smem:[#allocation4 + $0x184]]
        %v533 = vstv %s532
        %v534 = vmul.f32 %v512, %v533
        %v535 = vmul.f32 %v513, %v533
        %v536 = vadd.f32 %v491, %v534
        %v537 = vadd.f32 %v492, %v535
        %s538 = sld [smem:[#allocation4 + $0x204]]
        %v539 = vstv %s538
        %v540 = vmul.f32 %v512, %v539
        %v541 = vmul.f32 %v513, %v539
        %v542 = vadd.f32 %v497, %v540
        %v543 = vadd.f32 %v498, %v541
        %s544 = sld [smem:[#allocation4 + $0x284]]
        %v545 = vstv %s544
        %v546 = vmul.f32 %v512, %v545
        %v547 = vmul.f32 %v513, %v545
        %v548 = vadd.f32 %v503, %v546
        %v549 = vadd.f32 %v504, %v547
        %s550 = sld [smem:[#allocation4 + $0x304]]
        %v551 = vstv %s550
        %v552 = vmul.f32 %v512, %v551
        %v553 = vmul.f32 %v513, %v551
        %v554 = vadd.f32 %v509, %v552
        %v555 = vadd.f32 %v510, %v553
        %s556 = scalar_lea.vmem %s320, 80
        %v557 = vld [vmem:[%s556] sm:$0xff]
        %v558 = vld [vmem:[%s556 + $0x8] sm:$0xff]
        %s559 = sld [smem:[#allocation4 + $0x5]]
        %v560 = vstv %s559
        %v561 = vmul.f32 %v557, %v560
        %v562 = vmul.f32 %v558, %v560
        %v563 = vadd.f32 %v518, %v561
        %v564 = vadd.f32 %v519, %v562
        %s565 = sld [smem:[#allocation4 + $0x85]]
        %v566 = vstv %s565
        %v567 = vmul.f32 %v557, %v566
        %v568 = vmul.f32 %v558, %v566
        %v569 = vadd.f32 %v524, %v567
        %v570 = vadd.f32 %v525, %v568
        %s571 = sld [smem:[#allocation4 + $0x105]]
        %v572 = vstv %s571
        %v573 = vmul.f32 %v557, %v572
        %v574 = vmul.f32 %v558, %v572
        %v575 = vadd.f32 %v530, %v573
        %v576 = vadd.f32 %v531, %v574
        %s577 = sld [smem:[#allocation4 + $0x185]]
        %v578 = vstv %s577
        %v579 = vmul.f32 %v557, %v578
        %v580 = vmul.f32 %v558, %v578
        %v581 = vadd.f32 %v536, %v579
        %v582 = vadd.f32 %v537, %v580
        %s583 = sld [smem:[#allocation4 + $0x205]]
        %v584 = vstv %s583
        %v585 = vmul.f32 %v557, %v584
        %v586 = vmul.f32 %v558, %v584
        %v587 = vadd.f32 %v542, %v585
        %v588 = vadd.f32 %v543, %v586
        %s589 = sld [smem:[#allocation4 + $0x285]]
        %v590 = vstv %s589
        %v591 = vmul.f32 %v557, %v590
        %v592 = vmul.f32 %v558, %v590
        %v593 = vadd.f32 %v548, %v591
        %v594 = vadd.f32 %v549, %v592
        %s595 = sld [smem:[#allocation4 + $0x305]]
        %v596 = vstv %s595
        %v597 = vmul.f32 %v557, %v596
        %v598 = vmul.f32 %v558, %v596
        %v599 = vadd.f32 %v554, %v597
        %v600 = vadd.f32 %v555, %v598
        %s601 = scalar_lea.vmem %s320, 96
        %v602 = vld [vmem:[%s601] sm:$0xff]
        %v603 = vld [vmem:[%s601 + $0x8] sm:$0xff]
        %s604 = sld [smem:[#allocation4 + $0x6]]
        %v605 = vstv %s604
        %v606 = vmul.f32 %v602, %v605
        %v607 = vmul.f32 %v603, %v605
        %v608 = vadd.f32 %v563, %v606
        %v609 = vadd.f32 %v564, %v607
        %s610 = sld [smem:[#allocation4 + $0x86]]
        %v611 = vstv %s610
        %v612 = vmul.f32 %v602, %v611
        %v613 = vmul.f32 %v603, %v611
        %v614 = vadd.f32 %v569, %v612
        %v615 = vadd.f32 %v570, %v613
        %s616 = sld [smem:[#allocation4 + $0x106]]
        %v617 = vstv %s616
        %v618 = vmul.f32 %v602, %v617
        %v619 = vmul.f32 %v603, %v617
        %v620 = vadd.f32 %v575, %v618
        %v621 = vadd.f32 %v576, %v619
        %s622 = sld [smem:[#allocation4 + $0x186]]
        %v623 = vstv %s622
        %v624 = vmul.f32 %v602, %v623
        %v625 = vmul.f32 %v603, %v623
        %v626 = vadd.f32 %v581, %v624
        %v627 = vadd.f32 %v582, %v625
        %s628 = sld [smem:[#allocation4 + $0x206]]
        %v629 = vstv %s628
        %v630 = vmul.f32 %v602, %v629
        %v631 = vmul.f32 %v603, %v629
        %v632 = vadd.f32 %v587, %v630
        %v633 = vadd.f32 %v588, %v631
        %s634 = sld [smem:[#allocation4 + $0x286]]
        %v635 = vstv %s634
        %v636 = vmul.f32 %v602, %v635
        %v637 = vmul.f32 %v603, %v635
        %v638 = vadd.f32 %v593, %v636
        %v639 = vadd.f32 %v594, %v637
        %s640 = sld [smem:[#allocation4 + $0x306]]
        %v641 = vstv %s640
        %v642 = vmul.f32 %v602, %v641
        %v643 = vmul.f32 %v603, %v641
        %v644 = vadd.f32 %v599, %v642
        %v645 = vadd.f32 %v600, %v643
        %s646 = scalar_lea.vmem %s320, 112
        %v647 = vld [vmem:[%s646] sm:$0xff]
        %v648 = vld [vmem:[%s646 + $0x8] sm:$0xff]
        %s649 = sld [smem:[#allocation4 + $0x7]]
        %v650 = vstv %s649
        %v651 = vmul.f32 %v647, %v650
        %v652 = vmul.f32 %v648, %v650
        %v653 = vadd.f32 %v608, %v651
        %v654 = vadd.f32 %v609, %v652
        %s655 = sld [smem:[#allocation4 + $0x87]]
        %v656 = vstv %s655
        %v657 = vmul.f32 %v647, %v656
        %v658 = vmul.f32 %v648, %v656
        %v659 = vadd.f32 %v614, %v657
        %v660 = vadd.f32 %v615, %v658
        %s661 = sld [smem:[#allocation4 + $0x107]]
        %v662 = vstv %s661
        %v663 = vmul.f32 %v647, %v662
        %v664 = vmul.f32 %v648, %v662
        %v665 = vadd.f32 %v620, %v663
        %v666 = vadd.f32 %v621, %v664
        %s667 = sld [smem:[#allocation4 + $0x187]]
        %v668 = vstv %s667
        %v669 = vmul.f32 %v647, %v668
        %v670 = vmul.f32 %v648, %v668
        %v671 = vadd.f32 %v626, %v669
        %v672 = vadd.f32 %v627, %v670
        %s673 = sld [smem:[#allocation4 + $0x207]]
        %v674 = vstv %s673
        %v675 = vmul.f32 %v647, %v674
        %v676 = vmul.f32 %v648, %v674
        %v677 = vadd.f32 %v632, %v675
        %v678 = vadd.f32 %v633, %v676
        %s679 = sld [smem:[#allocation4 + $0x287]]
        %v680 = vstv %s679
        %v681 = vmul.f32 %v647, %v680
        %v682 = vmul.f32 %v648, %v680
        %v683 = vadd.f32 %v638, %v681
        %v684 = vadd.f32 %v639, %v682
        %s685 = sld [smem:[#allocation4 + $0x307]]
        %v686 = vstv %s685
        %v687 = vmul.f32 %v647, %v686
        %v688 = vmul.f32 %v648, %v686
        %v689 = vadd.f32 %v644, %v687
        %v690 = vadd.f32 %v645, %v688
        %s691 = scalar_lea.vmem %s320, 128
        %v692 = vld [vmem:[%s691] sm:$0xff]
        %v693 = vld [vmem:[%s691 + $0x8] sm:$0xff]
        %s694 = sld [smem:[#allocation4 + $0x8]]
        %v695 = vstv %s694
        %v696 = vmul.f32 %v692, %v695
        %v697 = vmul.f32 %v693, %v695
        %v698 = vadd.f32 %v653, %v696
        %v699 = vadd.f32 %v654, %v697
        %s700 = sld [smem:[#allocation4 + $0x88]]
        %v701 = vstv %s700
        %v702 = vmul.f32 %v692, %v701
        %v703 = vmul.f32 %v693, %v701
        %v704 = vadd.f32 %v659, %v702
        %v705 = vadd.f32 %v660, %v703
        %s706 = sld [smem:[#allocation4 + $0x108]]
        %v707 = vstv %s706
        %v708 = vmul.f32 %v692, %v707
        %v709 = vmul.f32 %v693, %v707
        %v710 = vadd.f32 %v665, %v708
        %v711 = vadd.f32 %v666, %v709
        %s712 = sld [smem:[#allocation4 + $0x188]]
        %v713 = vstv %s712
        %v714 = vmul.f32 %v692, %v713
        %v715 = vmul.f32 %v693, %v713
        %v716 = vadd.f32 %v671, %v714
        %v717 = vadd.f32 %v672, %v715
        %s718 = sld [smem:[#allocation4 + $0x208]]
        %v719 = vstv %s718
        %v720 = vmul.f32 %v692, %v719
        %v721 = vmul.f32 %v693, %v719
        %v722 = vadd.f32 %v677, %v720
        %v723 = vadd.f32 %v678, %v721
        %s724 = sld [smem:[#allocation4 + $0x288]]
        %v725 = vstv %s724
        %v726 = vmul.f32 %v692, %v725
        %v727 = vmul.f32 %v693, %v725
        %v728 = vadd.f32 %v683, %v726
        %v729 = vadd.f32 %v684, %v727
        %s730 = sld [smem:[#allocation4 + $0x308]]
        %v731 = vstv %s730
        %v732 = vmul.f32 %v692, %v731
        %v733 = vmul.f32 %v693, %v731
        %v734 = vadd.f32 %v689, %v732
        %v735 = vadd.f32 %v690, %v733
        %s736 = scalar_lea.vmem %s320, 144
        %v737 = vld [vmem:[%s736] sm:$0xff]
        %v738 = vld [vmem:[%s736 + $0x8] sm:$0xff]
        %s739 = sld [smem:[#allocation4 + $0x9]]
        %v740 = vstv %s739
        %v741 = vmul.f32 %v737, %v740
        %v742 = vmul.f32 %v738, %v740
        %v743 = vadd.f32 %v698, %v741
        %v744 = vadd.f32 %v699, %v742
        %s745 = sld [smem:[#allocation4 + $0x89]]
        %v746 = vstv %s745
        %v747 = vmul.f32 %v737, %v746
        %v748 = vmul.f32 %v738, %v746
        %v749 = vadd.f32 %v704, %v747
        %v750 = vadd.f32 %v705, %v748
        %s751 = sld [smem:[#allocation4 + $0x109]]
        %v752 = vstv %s751
        %v753 = vmul.f32 %v737, %v752
        %v754 = vmul.f32 %v738, %v752
        %v755 = vadd.f32 %v710, %v753
        %v756 = vadd.f32 %v711, %v754
        %s757 = sld [smem:[#allocation4 + $0x189]]
        %v758 = vstv %s757
        %v759 = vmul.f32 %v737, %v758
        %v760 = vmul.f32 %v738, %v758
        %v761 = vadd.f32 %v716, %v759
        %v762 = vadd.f32 %v717, %v760
        %s763 = sld [smem:[#allocation4 + $0x209]]
        %v764 = vstv %s763
        %v765 = vmul.f32 %v737, %v764
        %v766 = vmul.f32 %v738, %v764
        %v767 = vadd.f32 %v722, %v765
        %v768 = vadd.f32 %v723, %v766
        %s769 = sld [smem:[#allocation4 + $0x289]]
        %v770 = vstv %s769
        %v771 = vmul.f32 %v737, %v770
        %v772 = vmul.f32 %v738, %v770
        %v773 = vadd.f32 %v728, %v771
        %v774 = vadd.f32 %v729, %v772
        %s775 = sld [smem:[#allocation4 + $0x309]]
        %v776 = vstv %s775
        %v777 = vmul.f32 %v737, %v776
        %v778 = vmul.f32 %v738, %v776
        %v779 = vadd.f32 %v734, %v777
        %v780 = vadd.f32 %v735, %v778
        %s781 = scalar_lea.vmem %s320, 160
        %v782 = vld [vmem:[%s781] sm:$0xff]
        %v783 = vld [vmem:[%s781 + $0x8] sm:$0xff]
        %s784 = sld [smem:[#allocation4 + $0xa]]
        %v785 = vstv %s784
        %v786 = vmul.f32 %v782, %v785
        %v787 = vmul.f32 %v783, %v785
        %v788 = vadd.f32 %v743, %v786
        %v789 = vadd.f32 %v744, %v787
        %s790 = sld [smem:[#allocation4 + $0x8a]]
        %v791 = vstv %s790
        %v792 = vmul.f32 %v782, %v791
        %v793 = vmul.f32 %v783, %v791
        %v794 = vadd.f32 %v749, %v792
        %v795 = vadd.f32 %v750, %v793
        %s796 = sld [smem:[#allocation4 + $0x10a]]
        %v797 = vstv %s796
        %v798 = vmul.f32 %v782, %v797
        %v799 = vmul.f32 %v783, %v797
        %v800 = vadd.f32 %v755, %v798
        %v801 = vadd.f32 %v756, %v799
        %s802 = sld [smem:[#allocation4 + $0x18a]]
        %v803 = vstv %s802
        %v804 = vmul.f32 %v782, %v803
        %v805 = vmul.f32 %v783, %v803
        %v806 = vadd.f32 %v761, %v804
        %v807 = vadd.f32 %v762, %v805
        %s808 = sld [smem:[#allocation4 + $0x20a]]
        %v809 = vstv %s808
        %v810 = vmul.f32 %v782, %v809
        %v811 = vmul.f32 %v783, %v809
        %v812 = vadd.f32 %v767, %v810
        %v813 = vadd.f32 %v768, %v811
        %s814 = sld [smem:[#allocation4 + $0x28a]]
        %v815 = vstv %s814
        %v816 = vmul.f32 %v782, %v815
        %v817 = vmul.f32 %v783, %v815
        %v818 = vadd.f32 %v773, %v816
        %v819 = vadd.f32 %v774, %v817
        %s820 = sld [smem:[#allocation4 + $0x30a]]
        %v821 = vstv %s820
        %v822 = vmul.f32 %v782, %v821
        %v823 = vmul.f32 %v783, %v821
        %v824 = vadd.f32 %v779, %v822
        %v825 = vadd.f32 %v780, %v823
        %s826 = scalar_lea.vmem %s320, 176
        %v827 = vld [vmem:[%s826] sm:$0xff]
        %v828 = vld [vmem:[%s826 + $0x8] sm:$0xff]
        %s829 = sld [smem:[#allocation4 + $0xb]]
        %v830 = vstv %s829
        %v831 = vmul.f32 %v827, %v830
        %v832 = vmul.f32 %v828, %v830
        %v833 = vadd.f32 %v788, %v831
        %v834 = vadd.f32 %v789, %v832
        %s835 = sld [smem:[#allocation4 + $0x8b]]
        %v836 = vstv %s835
        %v837 = vmul.f32 %v827, %v836
        %v838 = vmul.f32 %v828, %v836
        %v839 = vadd.f32 %v794, %v837
        %v840 = vadd.f32 %v795, %v838
        %s841 = sld [smem:[#allocation4 + $0x10b]]
        %v842 = vstv %s841
        %v843 = vmul.f32 %v827, %v842
        %v844 = vmul.f32 %v828, %v842
        %v845 = vadd.f32 %v800, %v843
        %v846 = vadd.f32 %v801, %v844
        %s847 = sld [smem:[#allocation4 + $0x18b]]
        %v848 = vstv %s847
        %v849 = vmul.f32 %v827, %v848
        %v850 = vmul.f32 %v828, %v848
        %v851 = vadd.f32 %v806, %v849
        %v852 = vadd.f32 %v807, %v850
        %s853 = sld [smem:[#allocation4 + $0x20b]]
        %v854 = vstv %s853
        %v855 = vmul.f32 %v827, %v854
        %v856 = vmul.f32 %v828, %v854
        %v857 = vadd.f32 %v812, %v855
        %v858 = vadd.f32 %v813, %v856
        %s859 = sld [smem:[#allocation4 + $0x28b]]
        %v860 = vstv %s859
        %v861 = vmul.f32 %v827, %v860
        %v862 = vmul.f32 %v828, %v860
        %v863 = vadd.f32 %v818, %v861
        %v864 = vadd.f32 %v819, %v862
        %s865 = sld [smem:[#allocation4 + $0x30b]]
        %v866 = vstv %s865
        %v867 = vmul.f32 %v827, %v866
        %v868 = vmul.f32 %v828, %v866
        %v869 = vadd.f32 %v824, %v867
        %v870 = vadd.f32 %v825, %v868
        %s871 = scalar_lea.vmem %s320, 192
        %v872 = vld [vmem:[%s871] sm:$0xff]
        %v873 = vld [vmem:[%s871 + $0x8] sm:$0xff]
        %s874 = sld [smem:[#allocation4 + $0xc]]
        %v875 = vstv %s874
        %v876 = vmul.f32 %v872, %v875
        %v877 = vmul.f32 %v873, %v875
        %v878 = vadd.f32 %v833, %v876
        %v879 = vadd.f32 %v834, %v877
        %s880 = sld [smem:[#allocation4 + $0x8c]]
        %v881 = vstv %s880
        %v882 = vmul.f32 %v872, %v881
        %v883 = vmul.f32 %v873, %v881
        %v884 = vadd.f32 %v839, %v882
        %v885 = vadd.f32 %v840, %v883
        %s886 = sld [smem:[#allocation4 + $0x10c]]
        %v887 = vstv %s886
        %v888 = vmul.f32 %v872, %v887
        %v889 = vmul.f32 %v873, %v887
        %v890 = vadd.f32 %v845, %v888
        %v891 = vadd.f32 %v846, %v889
        %s892 = sld [smem:[#allocation4 + $0x18c]]
        %v893 = vstv %s892
        %v894 = vmul.f32 %v872, %v893
        %v895 = vmul.f32 %v873, %v893
        %v896 = vadd.f32 %v851, %v894
        %v897 = vadd.f32 %v852, %v895
        %s898 = sld [smem:[#allocation4 + $0x20c]]
        %v899 = vstv %s898
        %v900 = vmul.f32 %v872, %v899
        %v901 = vmul.f32 %v873, %v899
        %v902 = vadd.f32 %v857, %v900
        %v903 = vadd.f32 %v858, %v901
        %s904 = sld [smem:[#allocation4 + $0x28c]]
        %v905 = vstv %s904
        %v906 = vmul.f32 %v872, %v905
        %v907 = vmul.f32 %v873, %v905
        %v908 = vadd.f32 %v863, %v906
        %v909 = vadd.f32 %v864, %v907
        %s910 = sld [smem:[#allocation4 + $0x30c]]
        %v911 = vstv %s910
        %v912 = vmul.f32 %v872, %v911
        %v913 = vmul.f32 %v873, %v911
        %v914 = vadd.f32 %v869, %v912
        %v915 = vadd.f32 %v870, %v913
        %s916 = scalar_lea.vmem %s320, 208
        %v917 = vld [vmem:[%s916] sm:$0xff]
        %v918 = vld [vmem:[%s916 + $0x8] sm:$0xff]
        %s919 = sld [smem:[#allocation4 + $0xd]]
        %v920 = vstv %s919
        %v921 = vmul.f32 %v917, %v920
        %v922 = vmul.f32 %v918, %v920
        %v923 = vadd.f32 %v878, %v921
        %v924 = vadd.f32 %v879, %v922
        %s925 = sld [smem:[#allocation4 + $0x8d]]
        %v926 = vstv %s925
        %v927 = vmul.f32 %v917, %v926
        %v928 = vmul.f32 %v918, %v926
        %v929 = vadd.f32 %v884, %v927
        %v930 = vadd.f32 %v885, %v928
        %s931 = sld [smem:[#allocation4 + $0x10d]]
        %v932 = vstv %s931
        %v933 = vmul.f32 %v917, %v932
        %v934 = vmul.f32 %v918, %v932
        %v935 = vadd.f32 %v890, %v933
        %v936 = vadd.f32 %v891, %v934
        %s937 = sld [smem:[#allocation4 + $0x18d]]
        %v938 = vstv %s937
        %v939 = vmul.f32 %v917, %v938
        %v940 = vmul.f32 %v918, %v938
        %v941 = vadd.f32 %v896, %v939
        %v942 = vadd.f32 %v897, %v940
        %s943 = sld [smem:[#allocation4 + $0x20d]]
        %v944 = vstv %s943
        %v945 = vmul.f32 %v917, %v944
        %v946 = vmul.f32 %v918, %v944
        %v947 = vadd.f32 %v902, %v945
        %v948 = vadd.f32 %v903, %v946
        %s949 = sld [smem:[#allocation4 + $0x28d]]
        %v950 = vstv %s949
        %v951 = vmul.f32 %v917, %v950
        %v952 = vmul.f32 %v918, %v950
        %v953 = vadd.f32 %v908, %v951
        %v954 = vadd.f32 %v909, %v952
        %s955 = sld [smem:[#allocation4 + $0x30d]]
        %v956 = vstv %s955
        %v957 = vmul.f32 %v917, %v956
        %v958 = vmul.f32 %v918, %v956
        %v959 = vadd.f32 %v914, %v957
        %v960 = vadd.f32 %v915, %v958
        %s961 = scalar_lea.vmem %s320, 224
        %v962 = vld [vmem:[%s961] sm:$0xff]
        %v963 = vld [vmem:[%s961 + $0x8] sm:$0xff]
        %s964 = sld [smem:[#allocation4 + $0xe]]
        %v965 = vstv %s964
        %v966 = vmul.f32 %v962, %v965
        %v967 = vmul.f32 %v963, %v965
        %v968 = vadd.f32 %v923, %v966
        %v969 = vadd.f32 %v924, %v967
        %s970 = sld [smem:[#allocation4 + $0x8e]]
        %v971 = vstv %s970
        %v972 = vmul.f32 %v962, %v971
        %v973 = vmul.f32 %v963, %v971
        %v974 = vadd.f32 %v929, %v972
        %v975 = vadd.f32 %v930, %v973
        %s976 = sld [smem:[#allocation4 + $0x10e]]
        %v977 = vstv %s976
        %v978 = vmul.f32 %v962, %v977
        %v979 = vmul.f32 %v963, %v977
        %v980 = vadd.f32 %v935, %v978
        %v981 = vadd.f32 %v936, %v979
        %s982 = sld [smem:[#allocation4 + $0x18e]]
        %v983 = vstv %s982
        %v984 = vmul.f32 %v962, %v983
        %v985 = vmul.f32 %v963, %v983
        %v986 = vadd.f32 %v941, %v984
        %v987 = vadd.f32 %v942, %v985
        %s988 = sld [smem:[#allocation4 + $0x20e]]
        %v989 = vstv %s988
        %v990 = vmul.f32 %v962, %v989
        %v991 = vmul.f32 %v963, %v989
        %v992 = vadd.f32 %v947, %v990
        %v993 = vadd.f32 %v948, %v991
        %s994 = sld [smem:[#allocation4 + $0x28e]]
        %v995 = vstv %s994
        %v996 = vmul.f32 %v962, %v995
        %v997 = vmul.f32 %v963, %v995
        %v998 = vadd.f32 %v953, %v996
        %v999 = vadd.f32 %v954, %v997
        %s1000 = sld [smem:[#allocation4 + $0x30e]]
        %v1001 = vstv %s1000
        %v1002 = vmul.f32 %v962, %v1001
        %v1003 = vmul.f32 %v963, %v1001
        %v1004 = vadd.f32 %v959, %v1002
        %v1005 = vadd.f32 %v960, %v1003
        %s1006 = scalar_lea.vmem %s320, 240
        %v1007 = vld [vmem:[%s1006] sm:$0xff]
        %v1008 = vld [vmem:[%s1006 + $0x8] sm:$0xff]
        %s1009 = sld [smem:[#allocation4 + $0xf]]
        %v1010 = vstv %s1009
        %v1011 = vmul.f32 %v1007, %v1010
        %v1012 = vmul.f32 %v1008, %v1010
        %v1013 = vadd.f32 %v968, %v1011
        %v1014 = vadd.f32 %v969, %v1012
        %s1015 = sld [smem:[#allocation4 + $0x8f]]
        %v1016 = vstv %s1015
        %v1017 = vmul.f32 %v1007, %v1016
        %v1018 = vmul.f32 %v1008, %v1016
        %v1019 = vadd.f32 %v974, %v1017
        %v1020 = vadd.f32 %v975, %v1018
        %s1021 = sld [smem:[#allocation4 + $0x10f]]
        %v1022 = vstv %s1021
        %v1023 = vmul.f32 %v1007, %v1022
        %v1024 = vmul.f32 %v1008, %v1022
        %v1025 = vadd.f32 %v980, %v1023
        %v1026 = vadd.f32 %v981, %v1024
        %s1027 = sld [smem:[#allocation4 + $0x18f]]
        %v1028 = vstv %s1027
        %v1029 = vmul.f32 %v1007, %v1028
        %v1030 = vmul.f32 %v1008, %v1028
        %v1031 = vadd.f32 %v986, %v1029
        %v1032 = vadd.f32 %v987, %v1030
        %s1033 = sld [smem:[#allocation4 + $0x20f]]
        %v1034 = vstv %s1033
        %v1035 = vmul.f32 %v1007, %v1034
        %v1036 = vmul.f32 %v1008, %v1034
        %v1037 = vadd.f32 %v992, %v1035
        %v1038 = vadd.f32 %v993, %v1036
        %s1039 = sld [smem:[#allocation4 + $0x28f]]
        %v1040 = vstv %s1039
        %v1041 = vmul.f32 %v1007, %v1040
        %v1042 = vmul.f32 %v1008, %v1040
        %v1043 = vadd.f32 %v998, %v1041
        %v1044 = vadd.f32 %v999, %v1042
        %s1045 = sld [smem:[#allocation4 + $0x30f]]
        %v1046 = vstv %s1045
        %v1047 = vmul.f32 %v1007, %v1046
        %v1048 = vmul.f32 %v1008, %v1046
        %v1049 = vadd.f32 %v1004, %v1047
        %v1050 = vadd.f32 %v1005, %v1048
        %s1051 = sld [smem:[#allocation2]]
        %v1052 = vstv %s1051
        %v1053 = vadd.f32 %v1013, %v1052
        %v1054 = vadd.f32 %v1014, %v1052
        %v1055 = vxor.u32 %v1053, 2147483648
        %v1056 = vxor.u32 %v1054, 2147483648
        %v1057 = vmul.f32 %v1055, 1.442695
        %v1058 = vpow.pop %v1057
        %v1059 = vmul.f32 %v1056, 1.442695
        %v1060 = vpow.pop %v1059
        %v1061 = vadd.f32 %v1058, 1.0
        %v1062 = vadd.f32 %v1060, 1.0
        %v1063 = vrcp.pop %v1061
        %v1064 = vmul.f32 1.0, %v1063
        %v1065 = vrcp.pop %v1062
        %v1066 = vmul.f32 1.0, %v1065
        %s1067 = sld [smem:[#allocation3]]
        %v1068 = vstv %s1067
        %v1069 = vadd.f32 %v1068, 0.0
        %v1072 = vrot.slane %v1019, 7
        %v1073 = vrot.slane %v1020, 7
        %vm1076 = vcmask 1040384
        %v1077 = vsel %vm1076, 0.0, %v1072
        %v1078 = vsel %vm1076, 0.0, %v1073
        %v1081 = vrot.slane %v1043, 1
        %v1082 = vrot.slane %v1044, 1
        %vm1085 = vcmask 1046528
        %v1086 = vsel %vm1085, %v1081, 0.0
        %v1087 = vsel %vm1085, %v1082, 0.0
        %v1088 = vadd.f32 %v1077, %v1031
        %v1089 = vadd.f32 %v1078, %v1032
        %v1090 = vadd.f32 %v1088, %v1086
        %v1091 = vadd.f32 %v1089, %v1087
        %s1092 = sld [smem:[#allocation6]]
        %v1093 = vstv %s1092
        %v1094 = vadd.f32 %v1090, %v1093
        %v1095 = vadd.f32 %v1091, %v1093
        %v1096 = vmul.f32 %v1094, 0.5
        %v1097 = vmul.f32 %v1095, 0.5
        %v1098 = vmul.f32 %v1094, 0.70710677
        %v1099 = vmul.f32 %v1095, 0.70710677
        %vm1100 = vcmp.ge.f32.partialorder %v1098, 0.0
        %vm1101 = vcmp.ge.f32.partialorder %v1099, 0.0
        %v1102 = vsel %vm1100, 1.0, -1.0
        %v1103 = vsel %vm1101, 1.0, -1.0
        %v1104 = vand.u32 2147483647, %v1098
        %v1105 = vand.u32 2147483647, %v1099
        %v1106 = vmul.f32 %v1104, 0.3275911
        %v1107 = vmul.f32 %v1105, 0.3275911
        %v1108 = vadd.f32 %v1106, 1.0
        %v1109 = vadd.f32 %v1107, 1.0
        %v1110 = vrcp.pop %v1108
        %v1111 = vrcp.pop %v1109
        %v1112 = vmul.f32 %v1110, 1.0614054
        %v1113 = vmul.f32 %v1111, 1.0614054
        %v1114 = vadd.f32 %v1112, -1.4531521
        %v1115 = vadd.f32 %v1113, -1.4531521
        %v1116 = vmul.f32 %v1110, %v1114
        %v1117 = vmul.f32 %v1111, %v1115
        %v1118 = vadd.f32 %v1116, 1.4214138
        %v1119 = vadd.f32 %v1117, 1.4214138
        %v1120 = vmul.f32 %v1110, %v1118
        %v1121 = vmul.f32 %v1111, %v1119
        %v1122 = vadd.f32 %v1120, -0.28449672
        %v1123 = vadd.f32 %v1121, -0.28449672
        %v1124 = vmul.f32 %v1110, %v1122
        %v1125 = vmul.f32 %v1111, %v1123
        %v1126 = vadd.f32 %v1124, 0.2548296
        %v1127 = vadd.f32 %v1125, 0.2548296
        %v1128 = vmul.f32 %v1110, %v1126
        %v1129 = vmul.f32 %v1111, %v1127
        %v1130 = vsub.f32 0.0, %v1104
        %v1131 = vsub.f32 0.0, %v1105
        %v1132 = vmul.f32 %v1130, %v1104
        %v1133 = vmul.f32 %v1131, %v1105
        %v1134 = vmul.f32 %v1132, 1.442695
        %v1135 = vpow.pop %v1134
        %v1136 = vmul.f32 %v1133, 1.442695
        %v1137 = vpow.pop %v1136
        %v1138 = vmul.f32 %v1128, %v1135
        %v1139 = vmul.f32 %v1129, %v1137
        %v1140 = vsub.f32 1.0, %v1138
        %v1141 = vsub.f32 1.0, %v1139
        %v1142 = vmul.f32 %v1102, %v1140
        %v1143 = vmul.f32 %v1103, %v1141
        %v1144 = vadd.f32 %v1142, 1.0
        %v1145 = vadd.f32 %v1143, 1.0
        %v1146 = vmul.f32 %v1096, %v1144
        %v1147 = vmul.f32 %v1097, %v1145
        %s1148 = sld [smem:[#allocation8]]
        %v1149 = vstv %s1148
        %v1150 = vmul.f32 %v1146, %v1149
        %v1151 = vmul.f32 %v1147, %v1149
        %v1152 = vadd.f32 %v1069, %v1150
        %v1153 = vadd.f32 %v1069, %v1151
        %v1156 = vrot.slane %v1025, 7
        %v1157 = vrot.slane %v1026, 7
        %v1160 = vsel %vm1076, 0.0, %v1156
        %v1161 = vsel %vm1076, 0.0, %v1157
        %v1164 = vrot.slane %v1049, 1
        %v1165 = vrot.slane %v1050, 1
        %v1168 = vsel %vm1085, %v1164, 0.0
        %v1169 = vsel %vm1085, %v1165, 0.0
        %v1170 = vadd.f32 %v1160, %v1037
        %v1171 = vadd.f32 %v1161, %v1038
        %v1172 = vadd.f32 %v1170, %v1168
        %v1173 = vadd.f32 %v1171, %v1169
        %s1174 = sld [smem:[#allocation6 + $0x1]]
        %v1175 = vstv %s1174
        %v1176 = vadd.f32 %v1172, %v1175
        %v1177 = vadd.f32 %v1173, %v1175
        %v1178 = vmul.f32 %v1176, 0.5
        %v1179 = vmul.f32 %v1177, 0.5
        %v1180 = vmul.f32 %v1176, 0.70710677
        %v1181 = vmul.f32 %v1177, 0.70710677
        %vm1182 = vcmp.ge.f32.partialorder %v1180, 0.0
        %vm1183 = vcmp.ge.f32.partialorder %v1181, 0.0
        %v1184 = vsel %vm1182, 1.0, -1.0
        %v1185 = vsel %vm1183, 1.0, -1.0
        %v1186 = vand.u32 2147483647, %v1180
        %v1187 = vand.u32 2147483647, %v1181
        %v1188 = vmul.f32 %v1186, 0.3275911
        %v1189 = vmul.f32 %v1187, 0.3275911
        %v1190 = vadd.f32 %v1188, 1.0
        %v1191 = vadd.f32 %v1189, 1.0
        %v1192 = vrcp.pop %v1190
        %v1193 = vrcp.pop %v1191
        %v1194 = vmul.f32 %v1192, 1.0614054
        %v1195 = vmul.f32 %v1193, 1.0614054
        %v1196 = vadd.f32 %v1194, -1.4531521
        %v1197 = vadd.f32 %v1195, -1.4531521
        %v1198 = vmul.f32 %v1192, %v1196
        %v1199 = vmul.f32 %v1193, %v1197
        %v1200 = vadd.f32 %v1198, 1.4214138
        %v1201 = vadd.f32 %v1199, 1.4214138
        %v1202 = vmul.f32 %v1192, %v1200
        %v1203 = vmul.f32 %v1193, %v1201
        %v1204 = vadd.f32 %v1202, -0.28449672
        %v1205 = vadd.f32 %v1203, -0.28449672
        %v1206 = vmul.f32 %v1192, %v1204
        %v1207 = vmul.f32 %v1193, %v1205
        %v1208 = vadd.f32 %v1206, 0.2548296
        %v1209 = vadd.f32 %v1207, 0.2548296
        %v1210 = vmul.f32 %v1192, %v1208
        %v1211 = vmul.f32 %v1193, %v1209
        %v1212 = vsub.f32 0.0, %v1186
        %v1213 = vsub.f32 0.0, %v1187
        %v1214 = vmul.f32 %v1212, %v1186
        %v1215 = vmul.f32 %v1213, %v1187
        %v1216 = vmul.f32 %v1214, 1.442695
        %v1217 = vpow.pop %v1216
        %v1218 = vmul.f32 %v1215, 1.442695
        %v1219 = vpow.pop %v1218
        %v1220 = vmul.f32 %v1210, %v1217
        %v1221 = vmul.f32 %v1211, %v1219
        %v1222 = vsub.f32 1.0, %v1220
        %v1223 = vsub.f32 1.0, %v1221
        %v1224 = vmul.f32 %v1184, %v1222
        %v1225 = vmul.f32 %v1185, %v1223
        %v1226 = vadd.f32 %v1224, 1.0
        %v1227 = vadd.f32 %v1225, 1.0
        %v1228 = vmul.f32 %v1178, %v1226
        %v1229 = vmul.f32 %v1179, %v1227
        %s1230 = sld [smem:[#allocation8 + $0x1]]
        %v1231 = vstv %s1230
        %v1232 = vmul.f32 %v1228, %v1231
        %v1233 = vmul.f32 %v1229, %v1231
        %v1234 = vadd.f32 %v1152, %v1232
        %v1235 = vadd.f32 %v1153, %v1233
        %v1236 = vxor.u32 %v1234, 2147483648
        %v1237 = vxor.u32 %v1235, 2147483648
        %v1238 = vmul.f32 %v1236, 1.442695
        %v1239 = vpow.pop %v1238
        %v1240 = vmul.f32 %v1237, 1.442695
        %v1241 = vpow.pop %v1240
        %v1242 = vadd.f32 %v1239, 1.0
        %v1243 = vadd.f32 %v1241, 1.0
        %v1244 = vrcp.pop %v1242
        %v1245 = vmul.f32 1.0, %v1244
        %v1246 = vrcp.pop %v1243
        %v1247 = vmul.f32 1.0, %v1246
        %v1248 = vmul.f32 %v1064, %v1245
        %v1249 = vmul.f32 %v1066, %v1247
        %v1250 = vmul.f32 %v332, %v1248
        %v1251 = vmul.f32 %v333, %v1249
        %1252 = vst [vmem:[%s330] sm:$0xff] %v1250
        %1253 = vst [vmem:[%s330 + $0x8] sm:$0xff] %v1251
        %v1254 = vld [vmem:[%s376] sm:$0xff]
        %v1255 = vld [vmem:[%s376 + $0x8] sm:$0xff]
        %v1256 = vmul.f32 %v1254, %v1248
        %v1257 = vmul.f32 %v1255, %v1249
        %s1258 = scalar_lea.vmem %s330, 16
        %1259 = vst [vmem:[%s1258] sm:$0xff] %v1256
        %1260 = vst [vmem:[%s1258 + $0x8] sm:$0xff] %v1257
        %v1261 = vld [vmem:[%s421] sm:$0xff]
        %v1262 = vld [vmem:[%s421 + $0x8] sm:$0xff]
        %v1263 = vmul.f32 %v1261, %v1248
        %v1264 = vmul.f32 %v1262, %v1249
        %s1265 = scalar_lea.vmem %s330, 32
        %1266 = vst [vmem:[%s1265] sm:$0xff] %v1263
        %1267 = vst [vmem:[%s1265 + $0x8] sm:$0xff] %v1264
        %v1268 = vld [vmem:[%s466] sm:$0xff]
        %v1269 = vld [vmem:[%s466 + $0x8] sm:$0xff]
        %v1270 = vmul.f32 %v1268, %v1248
        %v1271 = vmul.f32 %v1269, %v1249
        %s1272 = scalar_lea.vmem %s330, 48
        %1273 = vst [vmem:[%s1272] sm:$0xff] %v1270
        %1274 = vst [vmem:[%s1272 + $0x8] sm:$0xff] %v1271
        %v1275 = vld [vmem:[%s511] sm:$0xff]
        %v1276 = vld [vmem:[%s511 + $0x8] sm:$0xff]
        %v1277 = vmul.f32 %v1275, %v1248
        %v1278 = vmul.f32 %v1276, %v1249
        %s1279 = scalar_lea.vmem %s330, 64
        %1280 = vst [vmem:[%s1279] sm:$0xff] %v1277
        %1281 = vst [vmem:[%s1279 + $0x8] sm:$0xff] %v1278
        %v1282 = vld [vmem:[%s556] sm:$0xff]
        %v1283 = vld [vmem:[%s556 + $0x8] sm:$0xff]
        %v1284 = vmul.f32 %v1282, %v1248
        %v1285 = vmul.f32 %v1283, %v1249
        %s1286 = scalar_lea.vmem %s330, 80
        %1287 = vst [vmem:[%s1286] sm:$0xff] %v1284
        %1288 = vst [vmem:[%s1286 + $0x8] sm:$0xff] %v1285
        %v1289 = vld [vmem:[%s601] sm:$0xff]
        %v1290 = vld [vmem:[%s601 + $0x8] sm:$0xff]
        %v1291 = vmul.f32 %v1289, %v1248
        %v1292 = vmul.f32 %v1290, %v1249
        %s1293 = scalar_lea.vmem %s330, 96
        %1294 = vst [vmem:[%s1293] sm:$0xff] %v1291
        %1295 = vst [vmem:[%s1293 + $0x8] sm:$0xff] %v1292
        %v1296 = vld [vmem:[%s646] sm:$0xff]
        %v1297 = vld [vmem:[%s646 + $0x8] sm:$0xff]
        %v1298 = vmul.f32 %v1296, %v1248
        %v1299 = vmul.f32 %v1297, %v1249
        %s1300 = scalar_lea.vmem %s330, 112
        %1301 = vst [vmem:[%s1300] sm:$0xff] %v1298
        %1302 = vst [vmem:[%s1300 + $0x8] sm:$0xff] %v1299
        %v1303 = vld [vmem:[%s691] sm:$0xff]
        %v1304 = vld [vmem:[%s691 + $0x8] sm:$0xff]
        %v1305 = vmul.f32 %v1303, %v1248
        %v1306 = vmul.f32 %v1304, %v1249
        %s1307 = scalar_lea.vmem %s330, 128
        %1308 = vst [vmem:[%s1307] sm:$0xff] %v1305
        %1309 = vst [vmem:[%s1307 + $0x8] sm:$0xff] %v1306
        %v1310 = vld [vmem:[%s736] sm:$0xff]
        %v1311 = vld [vmem:[%s736 + $0x8] sm:$0xff]
        %v1312 = vmul.f32 %v1310, %v1248
        %v1313 = vmul.f32 %v1311, %v1249
        %s1314 = scalar_lea.vmem %s330, 144
        %1315 = vst [vmem:[%s1314] sm:$0xff] %v1312
        %1316 = vst [vmem:[%s1314 + $0x8] sm:$0xff] %v1313
        %v1317 = vld [vmem:[%s781] sm:$0xff]
        %v1318 = vld [vmem:[%s781 + $0x8] sm:$0xff]
        %v1319 = vmul.f32 %v1317, %v1248
        %v1320 = vmul.f32 %v1318, %v1249
        %s1321 = scalar_lea.vmem %s330, 160
        %1322 = vst [vmem:[%s1321] sm:$0xff] %v1319
        %1323 = vst [vmem:[%s1321 + $0x8] sm:$0xff] %v1320
        %v1324 = vld [vmem:[%s826] sm:$0xff]
        %v1325 = vld [vmem:[%s826 + $0x8] sm:$0xff]
        %v1326 = vmul.f32 %v1324, %v1248
        %v1327 = vmul.f32 %v1325, %v1249
        %s1328 = scalar_lea.vmem %s330, 176
        %1329 = vst [vmem:[%s1328] sm:$0xff] %v1326
        %1330 = vst [vmem:[%s1328 + $0x8] sm:$0xff] %v1327
        %v1331 = vld [vmem:[%s871] sm:$0xff]
        %v1332 = vld [vmem:[%s871 + $0x8] sm:$0xff]
        %v1333 = vmul.f32 %v1331, %v1248
        %v1334 = vmul.f32 %v1332, %v1249
        %s1335 = scalar_lea.vmem %s330, 192
        %1336 = vst [vmem:[%s1335] sm:$0xff] %v1333
        %1337 = vst [vmem:[%s1335 + $0x8] sm:$0xff] %v1334
        %v1338 = vld [vmem:[%s916] sm:$0xff]
        %v1339 = vld [vmem:[%s916 + $0x8] sm:$0xff]
        %v1340 = vmul.f32 %v1338, %v1248
        %v1341 = vmul.f32 %v1339, %v1249
        %s1342 = scalar_lea.vmem %s330, 208
        %1343 = vst [vmem:[%s1342] sm:$0xff] %v1340
        %1344 = vst [vmem:[%s1342 + $0x8] sm:$0xff] %v1341
        %v1345 = vld [vmem:[%s961] sm:$0xff]
        %v1346 = vld [vmem:[%s961 + $0x8] sm:$0xff]
        %v1347 = vmul.f32 %v1345, %v1248
        %v1348 = vmul.f32 %v1346, %v1249
        %s1349 = scalar_lea.vmem %s330, 224
        %1350 = vst [vmem:[%s1349] sm:$0xff] %v1347
        %1351 = vst [vmem:[%s1349 + $0x8] sm:$0xff] %v1348
        %v1352 = vld [vmem:[%s1006] sm:$0xff]
        %v1353 = vld [vmem:[%s1006 + $0x8] sm:$0xff]
        %v1354 = vmul.f32 %v1352, %v1248
        %v1355 = vmul.f32 %v1353, %v1249
        %s1356 = scalar_lea.vmem %s330, 240
        %1357 = vst [vmem:[%s1356] sm:$0xff] %v1354
        %1358 = vst [vmem:[%s1356 + $0x8] sm:$0xff] %v1355
        %s1359 = smul.u32 2, %s26
        %p1360 = scmp.lt.s32.totalorder %s25, 1
        %s1361 = scalar_select %p1360, %s25, 1
        %p1362 = scmp.lt.s32.totalorder %s1359, 1
        %s1363 = scalar_select %p1362, %s1359, 1
        %s1364 = smul.addr %s1361, 32
        %s1365 = sadd.s32 %s1363, %s1364
        %s1366 = smul.addr %s1365, 8
        %s1367 = scalar_lea.vmem %s6, %s1366
        // Predicated region
        $region57: #{spatio_temporal_attention_3d.1} parent=43 // pred_check
          %p1368 = pneg %p186
        $region58: #{spatio_temporal_attention_3d.1} parent=43 // pred_check_branch
          %1370 = sbr.rel (%p1368) target = $region60
        $region59: #{spatio_temporal_attention_3d.1} parent=43 // pred_region
          %s1371 = smul.u32 2, %s26
        $region60: #{spatio_temporal_attention_3d.1} parent=43 // pred_fallthru
          _
      $region44: #{spatio_temporal_attention_3d.1} parent=5 // pred_fallthru
        _
      %p1372 = scmp.le.s32.totalorder 2, %s16
      // Predicated region
      $region61: #{spatio_temporal_attention_3d.1} parent=5 // pred_check
        %p1373 = pneg %p1372
      $region62: #{spatio_temporal_attention_3d.1} parent=5 // pred_check_branch
        %1375 = sbr.rel (%p1373) target = $region64
      $region63: #{spatio_temporal_attention_3d.1} parent=5 // pred_region
        %s1376 = ssub.s32 %s16, 2
        // Predicated region
        $region65: #{spatio_temporal_attention_3d.1} parent=63 // pred_check
          %p1377 = pneg %p192
        $region66: #{spatio_temporal_attention_3d.1} parent=63 // pred_check_branch
          %1379 = sbr.rel (%p1377) target = $region68
        $region67: #{spatio_temporal_attention_3d.1} parent=63 // pred_region
          %s1380 = smul.u32 2, %s28
          %p1381 = scmp.lt.s32.totalorder %s27, 1
          %s1382 = scalar_select %p1381, %s27, 1
          %p1383 = scmp.lt.s32.totalorder %s1380, 1
          %s1384 = scalar_select %p1383, %s1380, 1
          %s1385 = smul.addr %s1382, 32
          %s1386 = sadd.s32 %s1384, %s1385
          %s1387 = smul.addr %s1386, 8
          %s1388 = scalar_lea.vmem %s6, %s1387
        $region68: #{spatio_temporal_attention_3d.1} parent=63 // pred_fallthru
          _
      $region64: #{spatio_temporal_attention_3d.1} parent=5 // pred_fallthru
        _
    $region6: #{spatio_temporal_attention_3d.1} parent=1 // loop_footer
      %s20 = sadd.s32 1, %s16
    $region7: #{spatio_temporal_attention_3d.1} parent=1 // loop_footer_branch
      %15 = sbr.rel target = $region3
    $region8: #{spatio_temporal_attention_3d.1} parent=1 // loop_exit
      _
    %1389 = vsyncpa [#allocation5], 1
    %s1390 = scalar_lea.sflag [#allocation5], 1
    %1391 = vsyncpa %s1390, 1
    %1392 = vsyncpa [#allocation7], 1

</llo_original>
